<compile_context>
chip_gen: v6e
topology: v6e:2x2x1
jax: 0.10.0
libtpu: 0.0.40
codegen_flags: <defaults>
</compile_context>

<pallas_src>
import jax
import jax.numpy as jnp
from jax.experimental import pallas as pl
from jax.experimental.pallas import tpu as pltpu


def _mul_conv1x1_kernel(w_ref, x_ref, o_ref):
    # w_ref: (Cout, Cin) scale-folded weight (same block every grid step)
    # x_ref: (1, Cin, tm) input tile; o_ref: (1, Cout, tm) lane-dense output tile
    o_ref[0] = jnp.dot(
        w_ref[...], x_ref[0], preferred_element_type=jnp.float32
    ).astype(o_ref.dtype)


def mul_conv1x1(x_nchw, scale_nc11, weight_oihw, *, tm=1664, io_dtype=None):
    """Conv2d(1x1, bias=False)(x_nchw * scale_nc11), computed transpose-free.

    x_nchw: (N, Cin, H, W); scale_nc11: (1, Cin, 1, 1); weight_oihw: (Cout, Cin, 1, 1).
    io_dtype: optional narrower I/O dtype (e.g. jnp.bfloat16) for the
      memory-bound fast path; accumulation stays in f32.
    """
    N, Cin, H, W = x_nchw.shape
    Cout = weight_oihw.shape[0]
    M = H * W

    # Fold the channel scale into the weight: (x * s) @ W == x @ (diag(s) W).
    w_scaled = weight_oihw.reshape(Cout, Cin) * scale_nc11.reshape(1, Cin)

    # NCHW -> (N, Cin, M) is a free reshape (no HBM transpose traffic).
    x_flat = x_nchw.reshape(N, Cin, M)

    if io_dtype is not None and io_dtype != x_flat.dtype:
        # TODO(synk): ideally the producer of x61 emits bf16 directly so this
        # cast does not cost an extra HBM pass.
        x_flat = x_flat.astype(io_dtype)
        w_scaled = w_scaled.astype(io_dtype)
    out_dtype = x_flat.dtype

    # Tile size along M: either the full M, or a multiple of 128 (lane dim).
    if tm >= M:
        tm = M
    else:
        tm = max(128, (tm // 128) * 128)
    num_m_blocks = pl.cdiv(M, tm)

    # M is the leading grid axis so any megacore split shards spatial work;
    # a size-1 batch axis is dropped entirely (per perf review).
    if N == 1:
        grid = (num_m_blocks,)
        w_map = lambda j: (0, 0)
        x_map = lambda j: (0, 0, j)
        o_map = lambda j: (0, 0, j)
        dims = ("parallel",)
    else:
        grid = (num_m_blocks, N)
        w_map = lambda j, n: (0, 0)
        x_map = lambda j, n: (n, 0, j)
        o_map = lambda j, n: (n, 0, j)
        dims = ("parallel", "parallel")

    itemsize = jnp.dtype(out_dtype).itemsize
    cost = pl.CostEstimate(
        flops=2 * N * M * Cin * Cout,
        transcendentals=0,
        bytes_accessed=(x_flat.size + w_scaled.size + N * Cout * M) * itemsize,
    )

    out_flat = pl.pallas_call(
        _mul_conv1x1_kernel,
        out_shape=jax.ShapeDtypeStruct((N, Cout, M), out_dtype),
        grid_spec=pltpu.PrefetchScalarGridSpec(
            num_scalar_prefetch=0,
            grid=grid,
            in_specs=[
                pl.BlockSpec((Cout, Cin), w_map),
                pl.BlockSpec((1, Cin, tm), x_map),
            ],
            out_specs=pl.BlockSpec((1, Cout, tm), o_map),
        ),
        compiler_params=pltpu.CompilerParams(dimension_semantics=dims),
        cost_estimate=cost,
    )(w_scaled, x_flat)

    # (N, Cout, M) -> NCHW is a free reshape.
    return out_flat.reshape(N, Cout, H, W)


if __name__ == "__main__":
    key = jax.random.PRNGKey(0)
    k1, k2, k3 = jax.random.split(key, 3)

    # Shapes from the module spec: x61 (1,240,56,56), x66 (1,240,1,1), W (40,240,1,1).
    N, Cin, H, W = 1, 240, 56, 56
    Cout = 40

    x61 = jax.random.normal(k1, (N, Cin, H, W), dtype=jnp.float32)
    x66 = jax.random.normal(k2, (1, Cin, 1, 1), dtype=jnp.float32)
    conv_w = jax.random.normal(k3, (Cout, Cin, 1, 1), dtype=jnp.float32) * 0.05

    # Reference in plain JAX (matches the PyTorch forward: conv2d22(x61 * x66)).
    ref = jax.lax.conv_general_dilated(
        x61 * x66, conv_w, window_strides=(1, 1), padding="VALID",
        dimension_numbers=("NCHW", "OIHW", "NCHW"),
    )

    # f32 path (module-faithful numerics).
    out = jax.block_until_ready(mul_conv1x1(x61, x66, conv_w))
    assert out.shape == (N, Cout, H, W), out.shape
    assert jnp.allclose(out, ref, atol=2e-4, rtol=2e-4), "f32 mismatch vs reference"

    # bf16-I/O fast path (memory-bound win); f32 MXU accumulation, loose tol.
    out_bf16 = jax.block_until_ready(
        mul_conv1x1(x61, x66, conv_w, io_dtype=jnp.bfloat16)
    )
    assert out_bf16.shape == (N, Cout, H, W), out_bf16.shape
    assert jnp.allclose(out_bf16.astype(jnp.float32), ref, atol=1.5e-1, rtol=5e-2), (
        "bf16 mismatch vs reference"
    )

    print("KERNEL_OK")
</pallas_src>

<mosaic_0001>
module attributes {stable_mosaic.version = 11 : i64} {
  func.func @_mul_conv1x1_kernel(%arg0: i32, %arg1: memref<40x240xf32, #tpu.memory_space<vmem>>, %arg2: memref<1x240x1664xf32, #tpu.memory_space<vmem>>, %arg3: memref<1x40x1664xf32, #tpu.memory_space<vmem>>) attributes {dimension_semantics = [#tpu.dimension_semantics<parallel>], iteration_bounds = array<i64: 2>, scalar_prefetch = 0 : i64, scratch_operands = 0 : i64, tpu.core_type = #tpu.core_type<tc>, window_params = [{pipeline_mode = #tpu.pipeline_mode<synchronous>, transform_indices = @transform_0, window_bounds = array<i64: 40, 240>}, {transform_indices = @transform_1, window_bounds = array<i64: 1, 240, 1664>}, {transform_indices = @transform_2, window_bounds = array<i64: 1, 40, 1664>}]} {
    %c0 = arith.constant 0 : index
    %c0_0 = arith.constant 0 : index
    %0 = vector.load %arg1[%c0, %c0_0] : memref<40x240xf32, #tpu.memory_space<vmem>>, vector<40x240xf32>
    %c0_1 = arith.constant 0 : index
    %c0_2 = arith.constant 0 : index
    %c0_3 = arith.constant 0 : index
    %1 = vector.load %arg2[%c0_1, %c0_2, %c0_3] : memref<1x240x1664xf32, #tpu.memory_space<vmem>>, vector<1x240x1664xf32>
    %2 = vector.shape_cast %1 : vector<1x240x1664xf32> to vector<240x1664xf32>
    %cst = arith.constant dense<0.000000e+00> : vector<40x1664xf32>
    %3 = tpu.matmul %0, %2, %cst {dimension_numbers = #tpu.dot_dimension_numbers<[1], [0], [0], [1], [0, 0, 1, 1], [], []>} : vector<40x240xf32>, vector<240x1664xf32>, vector<40x1664xf32> -> vector<40x1664xf32>
    %c0_4 = arith.constant 0 : index
    %c0_5 = arith.constant 0 : index
    %c0_6 = arith.constant 0 : index
    %4 = vector.load %arg3[%c0_4, %c0_5, %c0_6] : memref<1x40x1664xf32, #tpu.memory_space<vmem>>, vector<1x40x1664xf32>
    %5 = vector.shape_cast %4 : vector<1x40x1664xf32> to vector<40x1664xf32>
    %6 = vector.shape_cast %3 : vector<40x1664xf32> to vector<1x40x1664xf32>
    tpu.vector_store %arg3[%c0_4, %c0_5, %c0_6], %6 {strides = array<i32>} : memref<1x40x1664xf32, #tpu.memory_space<vmem>>, vector<1x40x1664xf32>,
    return
  }
  func.func @transform_0(%arg0: i32) -> (i32, i32) {
    %c0_i32 = arith.constant 0 : i32
    %c0_i32_0 = arith.constant 0 : i32
    %c0_i32_1 = arith.constant 0 : i32
    return %c0_i32, %c0_i32_0 : i32, i32
  }
  func.func @transform_1(%arg0: i32) -> (i32, i32, i32) {
    %c0_i32 = arith.constant 0 : i32
    %c0_i32_0 = arith.constant 0 : i32
    %c0_i32_1 = arith.constant 0 : i32
    return %c0_i32, %c0_i32_0, %arg0 : i32, i32, i32
  }
  func.func @transform_2(%arg0: i32) -> (i32, i32, i32) {
    %c0_i32 = arith.constant 0 : i32
    %c0_i32_0 = arith.constant 0 : i32
    %c0_i32_1 = arith.constant 0 : i32
    return %c0_i32, %c0_i32_0, %arg0 : i32, i32, i32
  }
}

</mosaic_0001>

<llo_original>
// kernel: tpu_custom_call.1
$region0: #{tpu_custom_call.1}
  #allocation0 [shape = 'u32[]', space=smem, size = 0x4, offset = 0x4, fixed_abs, tag = 'smem constant byte address 0x4 - core index']
  #allocation1 [shape = 'u32[144,128]{1,0:T(1,128)}', space=vmem, size = 0x12000, scoped, tag = 'internal scratch']
  %s0 = inlined_call_operand.hbm [shape: f32[40,240], index: 0, kind: input, shape index: {}]
  %s1 = inlined_call_operand.hbm [shape: f32[1,240,3136], index: 1, kind: input, shape index: {}]
  %s2 = inlined_call_operand.hbm [shape: f32[1,40,3136], index: 2, kind: output, shape index: {}]
  %s3 = sld [smem:[#allocation0]]
  $region49: #{tpu_custom_call.1} parent=0
    _
  %s5 = ssub.s32 1, %s3
  %s6 = scalar_select 0, %s5, %s3
  $region1: #{tpu_custom_call.1} parent=0
    #allocation2 [shape = 'u8[40960]{0}', space=vmem, size = 0xa000, scoped, tag = 'input window, operand 0, single buffered']
    #allocation3 [shape = 's32[2]{0}', space=sflag, size = 0x8, scoped, tag = 'scoped memory for tpu_custom_call.1']
    #allocation4 [shape = 's32[2]{0}', space=sflag, size = 0x8, scoped, tag = 'scoped memory for tpu_custom_call.1']
    #allocation5 [shape = 'u8[3194880]{0}', space=vmem, size = 0x30c000, scoped, tag = 'input window, operand 1']
    #allocation6 [shape = 's32[2]{0}', space=sflag, size = 0x8, scoped, tag = 'scoped memory for tpu_custom_call.1']
    #allocation7 [shape = 'u8[532480]{0}', space=vmem, size = 0x82000, scoped, tag = 'output window, operand 0']
    %7 = vsyncpa [#allocation3], 0
    %8 = vsyncpa [#allocation6], 0
    %s9 = scalar_lea.sflag [#allocation6], 1
    %10 = vsyncpa %s9, 0
    %11 = vsyncpa [#allocation4], 0
    %s12 = scalar_lea.sflag [#allocation4], 1
    %13 = vsyncpa %s12, 0
    loop: start=0, step=1, limit=4
    $region2: #{tpu_custom_call.1} parent=1 // loop_pre_header
      _
    $region3: #{tpu_custom_call.1} parent=1 // loop_header
      %s15 = sphi 0, %s19
      %p16 = scmp.ge.s32.totalorder %s15, 4
      %s23 = sphi 0, %s23
      %s25 = sphi 0, %s23
      %s26 = sphi 0, %s25
      %s40 = sphi 0, %s26
      %s46 = sphi 0, %s48
      %s49 = sphi 0, %s46
      %s50 = sphi 0, %s49
      %s66 = sphi 0, %s50
      %s72 = sphi 0, %s74
      %s75 = sphi 0, %s72
      %s76 = sphi 0, %s75
      %s92 = sphi 0, %s76
    $region4: #{tpu_custom_call.1} parent=1 // loop_header_branch
      %18 = sbr.rel (%p16) target = $region8
    $region5: #{tpu_custom_call.1} parent=1 // loop_body
      %s20 = ssub.s32 %s15, 1
      %s21 = ssub.s32 %s15, 2
      %s22 = sadd.s32 %s15, 1
      %s24 = sadd.s32 %s23, 1
      %p27 = scmp.eq.s32.totalorder %s15, 1
      %p28 = scmp.ne.s32.totalorder %s23, %s25
      %p29 = scmp.eq.s32.totalorder %s15, 0
      %p30 = por %p28, %p29
      %p31 = scmp.ne.s32.totalorder %s23, %s25
      %p32 = scmp.eq.s32.totalorder %s20, 1
      %p33 = por %p31, %p32
      %p34 = scmp.ne.s32.totalorder %s25, %s26
      %p35 = scmp.eq.s32.totalorder %s20, 0
      %p36 = por %p34, %p35
      %p37 = scmp.ne.s32.totalorder %s25, %s26
      %p38 = scmp.eq.s32.totalorder %s21, 1
      %p39 = por %p37, %p38
      %p41 = scmp.ne.s32.totalorder %s26, %s40
      %p42 = scmp.eq.s32.totalorder %s21, 0
      %p43 = por %p41, %p42
      %s44 = ssub.s32 %s15, %s22
      %p45 = scmp.eq.s32.totalorder %s44, 0
      %s47 = sadd.s32 %s46, 1
      %s48 = scalar_select %p45, %s46, %s47
      %p51 = pneg %p45
      %p52 = scmp.eq.s32.totalorder %s15, 1
      %p53 = por %p51, %p52
      %p54 = scmp.ne.s32.totalorder %s46, %s49
      %p55 = scmp.eq.s32.totalorder %s15, 0
      %p56 = por %p54, %p55
      %p57 = scmp.ne.s32.totalorder %s46, %s49
      %p58 = scmp.eq.s32.totalorder %s20, 1
      %p59 = por %p57, %p58
      %p60 = scmp.ne.s32.totalorder %s49, %s50
      %p61 = scmp.eq.s32.totalorder %s20, 0
      %p62 = por %p60, %p61
      %p63 = scmp.ne.s32.totalorder %s49, %s50
      %p64 = scmp.eq.s32.totalorder %s21, 1
      %p65 = por %p63, %p64
      %p67 = scmp.ne.s32.totalorder %s50, %s66
      %p68 = scmp.eq.s32.totalorder %s21, 0
      %p69 = por %p67, %p68
      %s70 = ssub.s32 %s15, %s22
      %p71 = scmp.eq.s32.totalorder %s70, 0
      %s73 = sadd.s32 %s72, 1
      %s74 = scalar_select %p71, %s72, %s73
      %p77 = pneg %p71
      %p78 = scmp.eq.s32.totalorder %s15, 1
      %p79 = por %p77, %p78
      %p80 = scmp.ne.s32.totalorder %s72, %s75
      %p81 = scmp.eq.s32.totalorder %s15, 0
      %p82 = por %p80, %p81
      %p83 = scmp.ne.s32.totalorder %s72, %s75
      %p84 = scmp.eq.s32.totalorder %s20, 1
      %p85 = por %p83, %p84
      %p86 = scmp.ne.s32.totalorder %s75, %s76
      %p87 = scmp.eq.s32.totalorder %s20, 0
      %p88 = por %p86, %p87
      %p89 = scmp.ne.s32.totalorder %s75, %s76
      %p90 = scmp.eq.s32.totalorder %s21, 1
      %p91 = por %p89, %p90
      %p93 = scmp.ne.s32.totalorder %s76, %s92
      %p94 = scmp.eq.s32.totalorder %s21, 0
      %p95 = por %p93, %p94
      %p96 = scmp.le.s32.totalorder 1, %s15
      %p97 = scmp.lt.s32.totalorder %s15, 3
      %p98 = pnand %p96, %p97
      %p99 = pneg %p98
      // Predicated region
      $region9: #{tpu_custom_call.1} parent=5 // pred_check
        _
      $region10: #{tpu_custom_call.1} parent=5 // pred_check_branch
        %101 = sbr.rel (%p98) target = $region12
      $region11: #{tpu_custom_call.1} parent=5 // pred_region
        %s102 = ssub.s32 %s15, 1
        // Predicated region
        $region13: #{tpu_custom_call.1} parent=11 // pred_check
          %p103 = pneg %p36
        $region14: #{tpu_custom_call.1} parent=11 // pred_check_branch
          %105 = sbr.rel (%p103) target = $region16
        $region15: #{tpu_custom_call.1} parent=11 // pred_region
          %s107 = ssub.s32 1280, 1280
          %108 = vsyncadd [#allocation3], %s107
          %s109 = sshll.u32 [#allocation2], 4
          %s110 = int_to_ptr.vmem [resolvable:$true] %s109
          %115 = dma.hbm_to_vmem [thread:$0]  %s0, 1280, %s110, [#allocation3], 256, 256, 16
        $region16: #{tpu_custom_call.1} parent=11 // pred_fallthru
          _
      $region12: #{tpu_custom_call.1} parent=5 // pred_fallthru
        _
      %p116 = scmp.lt.s32.totalorder %s15, 2
      // Predicated region
      $region17: #{tpu_custom_call.1} parent=5 // pred_check
        %p117 = pneg %p116
      $region18: #{tpu_custom_call.1} parent=5 // pred_check_branch
        %119 = sbr.rel (%p117) target = $region20
      $region19: #{tpu_custom_call.1} parent=5 // pred_region
        // Predicated region
        $region21: #{tpu_custom_call.1} parent=19 // pred_check
          %p120 = pneg %p56
        $region22: #{tpu_custom_call.1} parent=19 // pred_check_branch
          %122 = sbr.rel (%p120) target = $region24
        $region23: #{tpu_custom_call.1} parent=19 // pred_region
          %s123 = sand.u32 %s46, 1
          %s124 = scalar_lea.sflag [#allocation6], %s123
          %s125 = sand.u32 %s46, 1
          %s126 = smul.addr %s125, 3120
          %s127 = scalar_lea.vmem [#allocation5], %s126
          %s128 = smul.u32 13, %s15
          %s129 = ssub.s32 25, %s128
          %p130 = scmp.lt.s32.totalorder %s129, 13
          %s131 = scalar_select %p130, %s129, 13
          %s132 = smul.u32 3840, %s131
          %s134 = ssub.s32 49920, %s132
          %135 = vsyncadd %s124, %s134
          %p136 = scmp.ne.s32.totalorder 0, %s132
          %s137 = smul.addr %s128, 128
          %s138 = scalar_lea.hbm %s1, %s137
          %s139 = smul.u32 %s131, 8
          %s140 = smul.u32 %s139, 30
          %s141 = sshll.u32 %s127, 4
          %s142 = int_to_ptr.vmem [resolvable:$true] %s141
          %s143 = sshll.u32 %s140, 4
          %147 = dma.hbm_to_vmem [thread:$0]  (%p136), %s138, %s143, %s142, %s124, 3200, 1664, %s139
        $region24: #{tpu_custom_call.1} parent=19 // pred_fallthru
          _
      $region20: #{tpu_custom_call.1} parent=5 // pred_fallthru
        _
      %p148 = scmp.le.s32.totalorder 1, %s15
      %p149 = scmp.lt.s32.totalorder %s15, 3
      %p150 = pnand %p148, %p149
      %p151 = pneg %p150
      // Predicated region
      $region25: #{tpu_custom_call.1} parent=5 // pred_check
        _
      $region26: #{tpu_custom_call.1} parent=5 // pred_check_branch
        %153 = sbr.rel (%p150) target = $region28
      $region27: #{tpu_custom_call.1} parent=5 // pred_region
        %s154 = ssub.s32 %s15, 1
        // Predicated region
        $region29: #{tpu_custom_call.1} parent=27 // pred_check
          %p155 = pneg %p36
        $region30: #{tpu_custom_call.1} parent=27 // pred_check_branch
          %157 = sbr.rel (%p155) target = $region32
        $region31: #{tpu_custom_call.1} parent=27 // pred_region
          %158 = dma.done [#allocation3], 1280
        $region32: #{tpu_custom_call.1} parent=27 // pred_fallthru
          _
        %s159 = sand.u32 %s49, 1
        %s160 = scalar_lea.sflag [#allocation6], %s159
        %s161 = sand.u32 %s49, 1
        %s162 = smul.addr %s161, 3120
        %s163 = scalar_lea.vmem [#allocation5], %s162
        // Predicated region
        $region33: #{tpu_custom_call.1} parent=27 // pred_check
          %p164 = pneg %p62
        $region34: #{tpu_custom_call.1} parent=27 // pred_check_branch
          %166 = sbr.rel (%p164) target = $region36
        $region35: #{tpu_custom_call.1} parent=27 // pred_region
          %167 = dma.done %s160, 49920
        $region36: #{tpu_custom_call.1} parent=27 // pred_fallthru
          _
        %p168 = pneg %p36
        %p169 = pneg %p33
        %s170 = sand.u32 %s49, 1
        %s171 = scalar_lea.sflag [#allocation6], %s170
        %s172 = sand.u32 %s49, 1
        %s173 = smul.addr %s172, 3120
        %s174 = scalar_lea.vmem [#allocation5], %s173
        %p175 = pneg %p62
        %p176 = pneg %p59
        %p177 = pneg %p88
        %p178 = pneg %p85
        %s179 = sand.u32 %s75, 1
        %s180 = scalar_lea.sflag [#allocation4], %s179
        %s181 = sand.u32 %s75, 1
        %s182 = smul.addr %s181, 520
        %s183 = scalar_lea.vmem [#allocation7], %s182
        %s184 = smul.u32 13, %s20
        %s185 = ssub.s32 25, %s184
        %p186 = scmp.lt.s32.totalorder %s185, 13
        %s187 = scalar_select %p186, %s185, 13
        %s188 = smul.u32 3840, %s187
        %s189 = smul.u32 13, %s20
        %s190 = ssub.s32 25, %s189
        %p191 = scmp.lt.s32.totalorder %s190, 13
        %s192 = scalar_select %p191, %s190, 13
        %s193 = smul.u32 640, %s192
        %v194 = vld [vmem:[#allocation2] sm:$0xff]
        %v195 = vld [vmem:[#allocation2 + $0x8] sm:$0xff]
        %v196 = vld [vmem:[#allocation2 + $0x10] sm:$0xff]
        %v197 = vld [vmem:[#allocation2 + $0x18] sm:$0xff]
        %v198 = vld [vmem:[#allocation2 + $0x20] sm:$0xff]
        %v199 = vld [vmem:[#allocation2 + $0x28] sm:$0xff]
        %v200 = vld [vmem:[#allocation2 + $0x30] sm:$0xff]
        %v201 = vld [vmem:[#allocation2 + $0x38] sm:$0xff]
        %v202 = vld [vmem:[#allocation2 + $0x40] sm:$0xff]
        %v203 = vld [vmem:[#allocation2 + $0x48] sm:$0xff]
        %v204 = vld [vmem:[%s163] sm:$0xff]
        %v205 = vld [vmem:[%s163 + $0x8] sm:$0xff]
        %v206 = vld [vmem:[%s163 + $0x10] sm:$0xff]
        %v207 = vld [vmem:[%s163 + $0x18] sm:$0xff]
        %v208 = vld [vmem:[%s163 + $0x20] sm:$0xff]
        %v209 = vld [vmem:[%s163 + $0x28] sm:$0xff]
        %v210 = vld [vmem:[%s163 + $0x30] sm:$0xff]
        %v211 = vld [vmem:[%s163 + $0x38] sm:$0xff]
        %v212 = vld [vmem:[%s163 + $0x40] sm:$0xff]
        %v213 = vld [vmem:[%s163 + $0x48] sm:$0xff]
        %v214 = vld [vmem:[%s163 + $0x50] sm:$0xff]
        %v215 = vld [vmem:[%s163 + $0x58] sm:$0xff]
        %v216 = vld [vmem:[%s163 + $0x60] sm:$0xff]
        %v217 = vld [vmem:[%s163 + $0x68] sm:$0xff]
        %v218 = vld [vmem:[%s163 + $0x70] sm:$0xff]
        %v219 = vld [vmem:[%s163 + $0x78] sm:$0xff]
        %v220 = vld [vmem:[%s163 + $0x80] sm:$0xff]
        %v221 = vld [vmem:[%s163 + $0x88] sm:$0xff]
        %v222 = vld [vmem:[%s163 + $0x90] sm:$0xff]
        %v223 = vld [vmem:[%s163 + $0x98] sm:$0xff]
        %v224 = vld [vmem:[%s163 + $0xa0] sm:$0xff]
        %v225 = vld [vmem:[%s163 + $0xa8] sm:$0xff]
        %v226 = vld [vmem:[%s163 + $0xb0] sm:$0xff]
        %v227 = vld [vmem:[%s163 + $0xb8] sm:$0xff]
        %v228 = vld [vmem:[%s163 + $0xc0] sm:$0xff]
        %v229 = vld [vmem:[%s163 + $0xc8] sm:$0xff]
        %v230 = vld [vmem:[%s163 + $0xd0] sm:$0xff]
        %v231 = vld [vmem:[%s163 + $0xd8] sm:$0xff]
        %v232 = vld [vmem:[%s163 + $0xe0] sm:$0xff]
        %v233 = vld [vmem:[%s163 + $0xe8] sm:$0xff]
        %v234 = vld [vmem:[%s163 + $0xf0] sm:$0xff]
        %v235 = vld [vmem:[%s163 + $0xf8] sm:$0xff]
        %v236 = vld [vmem:[%s163 + $0x100] sm:$0xff]
        %v237 = vld [vmem:[%s163 + $0x108] sm:$0xff]
        %v238 = vld [vmem:[%s163 + $0x110] sm:$0xff]
        %v239 = vld [vmem:[%s163 + $0x118] sm:$0xff]
        %v240 = vld [vmem:[%s163 + $0x120] sm:$0xff]
        %v241 = vld [vmem:[%s163 + $0x128] sm:$0xff]
        %v242 = vld [vmem:[%s163 + $0x130] sm:$0xff]
        %v243 = vld [vmem:[%s163 + $0x138] sm:$0xff]
        %v244 = vld [vmem:[%s163 + $0x140] sm:$0xff]
        %v245 = vld [vmem:[%s163 + $0x148] sm:$0xff]
        %v246 = vld [vmem:[%s163 + $0x150] sm:$0xff]
        %v247 = vld [vmem:[%s163 + $0x158] sm:$0xff]
        %v248 = vld [vmem:[%s163 + $0x160] sm:$0xff]
        %v249 = vld [vmem:[%s163 + $0x168] sm:$0xff]
        %v250 = vld [vmem:[%s163 + $0x170] sm:$0xff]
        %v251 = vld [vmem:[%s163 + $0x178] sm:$0xff]
        %v252 = vld [vmem:[%s163 + $0x180] sm:$0xff]
        %v253 = vld [vmem:[%s163 + $0x188] sm:$0xff]
        %v254 = vld [vmem:[%s163 + $0x190] sm:$0xff]
        %v255 = vld [vmem:[%s163 + $0x198] sm:$0xff]
        %v256 = vld [vmem:[%s163 + $0x1a0] sm:$0xff]
        %v257 = vld [vmem:[%s163 + $0x1a8] sm:$0xff]
        %v258 = vld [vmem:[%s163 + $0x1b0] sm:$0xff]
        %v259 = vld [vmem:[%s163 + $0x1b8] sm:$0xff]
        %v260 = vld [vmem:[%s163 + $0x1c0] sm:$0xff]
        %v261 = vld [vmem:[%s163 + $0x1c8] sm:$0xff]
        %v262 = vld [vmem:[%s163 + $0x1d0] sm:$0xff]
        %v263 = vld [vmem:[%s163 + $0x1d8] sm:$0xff]
        %v264 = vld [vmem:[%s163 + $0x1e0] sm:$0xff]
        %v265 = vld [vmem:[%s163 + $0x1e8] sm:$0xff]
        %v266 = vld [vmem:[%s163 + $0x1f0] sm:$0xff]
        %v267 = vld [vmem:[%s163 + $0x1f8] sm:$0xff]
        %v268 = vld [vmem:[%s163 + $0x200] sm:$0xff]
        %v269 = vld [vmem:[%s163 + $0x208] sm:$0xff]
        %v270 = vld [vmem:[%s163 + $0x210] sm:$0xff]
        %v271 = vld [vmem:[%s163 + $0x218] sm:$0xff]
        %v272 = vld [vmem:[%s163 + $0x220] sm:$0xff]
        %v273 = vld [vmem:[%s163 + $0x228] sm:$0xff]
        %v274 = vld [vmem:[%s163 + $0x230] sm:$0xff]
        %v275 = vld [vmem:[%s163 + $0x238] sm:$0xff]
        %v276 = vld [vmem:[%s163 + $0x240] sm:$0xff]
        %v277 = vld [vmem:[%s163 + $0x248] sm:$0xff]
        %v278 = vld [vmem:[%s163 + $0x250] sm:$0xff]
        %v279 = vld [vmem:[%s163 + $0x258] sm:$0xff]
        %v280 = vld [vmem:[%s163 + $0x260] sm:$0xff]
        %v281 = vld [vmem:[%s163 + $0x268] sm:$0xff]
        %v282 = vld [vmem:[%s163 + $0x270] sm:$0xff]
        %v283 = vld [vmem:[%s163 + $0x278] sm:$0xff]
        %v284 = vld [vmem:[%s163 + $0x280] sm:$0xff]
        %v285 = vld [vmem:[%s163 + $0x288] sm:$0xff]
        %v286 = vld [vmem:[%s163 + $0x290] sm:$0xff]
        %v287 = vld [vmem:[%s163 + $0x298] sm:$0xff]
        %v288 = vld [vmem:[%s163 + $0x2a0] sm:$0xff]
        %v289 = vld [vmem:[%s163 + $0x2a8] sm:$0xff]
        %v290 = vld [vmem:[%s163 + $0x2b0] sm:$0xff]
        %v291 = vld [vmem:[%s163 + $0x2b8] sm:$0xff]
        %v292 = vld [vmem:[%s163 + $0x2c0] sm:$0xff]
        %v293 = vld [vmem:[%s163 + $0x2c8] sm:$0xff]
        %v294 = vld [vmem:[%s163 + $0x2d0] sm:$0xff]
        %v295 = vld [vmem:[%s163 + $0x2d8] sm:$0xff]
        %v296 = vld [vmem:[%s163 + $0x2e0] sm:$0xff]
        %v297 = vld [vmem:[%s163 + $0x2e8] sm:$0xff]
        %v298 = vld [vmem:[%s163 + $0x2f0] sm:$0xff]
        %v299 = vld [vmem:[%s163 + $0x2f8] sm:$0xff]
        %v300 = vld [vmem:[%s163 + $0x300] sm:$0xff]
        %v301 = vld [vmem:[%s163 + $0x308] sm:$0xff]
        %v302 = vld [vmem:[%s163 + $0x310] sm:$0xff]
        %v303 = vld [vmem:[%s163 + $0x318] sm:$0xff]
        %v304 = vld [vmem:[%s163 + $0x320] sm:$0xff]
        %v305 = vld [vmem:[%s163 + $0x328] sm:$0xff]
        %v306 = vld [vmem:[%s163 + $0x330] sm:$0xff]
        %v307 = vld [vmem:[%s163 + $0x338] sm:$0xff]
        %v308 = vld [vmem:[%s163 + $0x340] sm:$0xff]
        %v309 = vld [vmem:[%s163 + $0x348] sm:$0xff]
        %v310 = vld [vmem:[%s163 + $0x350] sm:$0xff]
        %v311 = vld [vmem:[%s163 + $0x358] sm:$0xff]
        %v312 = vld [vmem:[%s163 + $0x360] sm:$0xff]
        %v313 = vld [vmem:[%s163 + $0x368] sm:$0xff]
        %v314 = vld [vmem:[%s163 + $0x370] sm:$0xff]
        %v315 = vld [vmem:[%s163 + $0x378] sm:$0xff]
        %v316 = vld [vmem:[%s163 + $0x380] sm:$0xff]
        %v317 = vld [vmem:[%s163 + $0x388] sm:$0xff]
        %v318 = vld [vmem:[%s163 + $0x390] sm:$0xff]
        %v319 = vld [vmem:[%s163 + $0x398] sm:$0xff]
        %v320 = vld [vmem:[%s163 + $0x3a0] sm:$0xff]
        %v321 = vld [vmem:[%s163 + $0x3a8] sm:$0xff]
        %v322 = vld [vmem:[%s163 + $0x3b0] sm:$0xff]
        %v323 = vld [vmem:[%s163 + $0x3b8] sm:$0xff]
        %v324 = vld [vmem:[%s163 + $0x3c0] sm:$0xff]
        %v325 = vld [vmem:[%s163 + $0x3c8] sm:$0xff]
        %v326 = vld [vmem:[%s163 + $0x3d0] sm:$0xff]
        %v327 = vld [vmem:[%s163 + $0x3d8] sm:$0xff]
        %v328 = vld [vmem:[%s163 + $0x3e0] sm:$0xff]
        %v329 = vld [vmem:[%s163 + $0x3e8] sm:$0xff]
        %v330 = vld [vmem:[%s163 + $0x3f0] sm:$0xff]
        %v331 = vld [vmem:[%s163 + $0x3f8] sm:$0xff]
        %v332 = vld [vmem:[%s163 + $0x400] sm:$0xff]
        %v333 = vld [vmem:[%s163 + $0x408] sm:$0xff]
        %v334 = vld [vmem:[%s163 + $0x410] sm:$0xff]
        %v335 = vld [vmem:[%s163 + $0x418] sm:$0xff]
        %v336 = vld [vmem:[%s163 + $0x420] sm:$0xff]
        %v337 = vld [vmem:[%s163 + $0x428] sm:$0xff]
        %v338 = vld [vmem:[%s163 + $0x430] sm:$0xff]
        %v339 = vld [vmem:[%s163 + $0x438] sm:$0xff]
        %v340 = vld [vmem:[%s163 + $0x440] sm:$0xff]
        %v341 = vld [vmem:[%s163 + $0x448] sm:$0xff]
        %v342 = vld [vmem:[%s163 + $0x450] sm:$0xff]
        %v343 = vld [vmem:[%s163 + $0x458] sm:$0xff]
        %v344 = vld [vmem:[%s163 + $0x460] sm:$0xff]
        %v345 = vld [vmem:[%s163 + $0x468] sm:$0xff]
        %v346 = vld [vmem:[%s163 + $0x470] sm:$0xff]
        %v347 = vld [vmem:[%s163 + $0x478] sm:$0xff]
        %v348 = vld [vmem:[%s163 + $0x480] sm:$0xff]
        %v349 = vld [vmem:[%s163 + $0x488] sm:$0xff]
        %v350 = vld [vmem:[%s163 + $0x490] sm:$0xff]
        %v351 = vld [vmem:[%s163 + $0x498] sm:$0xff]
        %v352 = vld [vmem:[%s163 + $0x4a0] sm:$0xff]
        %v353 = vld [vmem:[%s163 + $0x4a8] sm:$0xff]
        %v354 = vld [vmem:[%s163 + $0x4b0] sm:$0xff]
        %v355 = vld [vmem:[%s163 + $0x4b8] sm:$0xff]
        %v356 = vld [vmem:[%s163 + $0x4c0] sm:$0xff]
        %v357 = vld [vmem:[%s163 + $0x4c8] sm:$0xff]
        %v358 = vld [vmem:[%s163 + $0x4d0] sm:$0xff]
        %v359 = vld [vmem:[%s163 + $0x4d8] sm:$0xff]
        %v360 = vld [vmem:[%s163 + $0x4e0] sm:$0xff]
        %v361 = vld [vmem:[%s163 + $0x4e8] sm:$0xff]
        %v362 = vld [vmem:[%s163 + $0x4f0] sm:$0xff]
        %v363 = vld [vmem:[%s163 + $0x4f8] sm:$0xff]
        %v364 = vld [vmem:[%s163 + $0x500] sm:$0xff]
        %v365 = vld [vmem:[%s163 + $0x508] sm:$0xff]
        %v366 = vld [vmem:[%s163 + $0x510] sm:$0xff]
        %v367 = vld [vmem:[%s163 + $0x518] sm:$0xff]
        %v368 = vld [vmem:[%s163 + $0x520] sm:$0xff]
        %v369 = vld [vmem:[%s163 + $0x528] sm:$0xff]
        %v370 = vld [vmem:[%s163 + $0x530] sm:$0xff]
        %v371 = vld [vmem:[%s163 + $0x538] sm:$0xff]
        %v372 = vld [vmem:[%s163 + $0x540] sm:$0xff]
        %v373 = vld [vmem:[%s163 + $0x548] sm:$0xff]
        %v374 = vld [vmem:[%s163 + $0x550] sm:$0xff]
        %v375 = vld [vmem:[%s163 + $0x558] sm:$0xff]
        %v376 = vld [vmem:[%s163 + $0x560] sm:$0xff]
        %v377 = vld [vmem:[%s163 + $0x568] sm:$0xff]
        %v378 = vld [vmem:[%s163 + $0x570] sm:$0xff]
        %v379 = vld [vmem:[%s163 + $0x578] sm:$0xff]
        %v380 = vld [vmem:[%s163 + $0x580] sm:$0xff]
        %v381 = vld [vmem:[%s163 + $0x588] sm:$0xff]
        %v382 = vld [vmem:[%s163 + $0x590] sm:$0xff]
        %v383 = vld [vmem:[%s163 + $0x598] sm:$0xff]
        %v384 = vld [vmem:[%s163 + $0x5a0] sm:$0xff]
        %v385 = vld [vmem:[%s163 + $0x5a8] sm:$0xff]
        %v386 = vld [vmem:[%s163 + $0x5b0] sm:$0xff]
        %v387 = vld [vmem:[%s163 + $0x5b8] sm:$0xff]
        %v388 = vld [vmem:[%s163 + $0x5c0] sm:$0xff]
        %v389 = vld [vmem:[%s163 + $0x5c8] sm:$0xff]
        %v390 = vld [vmem:[%s163 + $0x5d0] sm:$0xff]
        %v391 = vld [vmem:[%s163 + $0x5d8] sm:$0xff]
        %v392 = vld [vmem:[%s163 + $0x5e0] sm:$0xff]
        %v393 = vld [vmem:[%s163 + $0x5e8] sm:$0xff]
        %v394 = vld [vmem:[%s163 + $0x5f0] sm:$0xff]
        %v395 = vld [vmem:[%s163 + $0x5f8] sm:$0xff]
        %v396 = vld [vmem:[%s163 + $0x600] sm:$0xff]
        %v397 = vld [vmem:[%s163 + $0x608] sm:$0xff]
        %v398 = vld [vmem:[%s163 + $0x610] sm:$0xff]
        %v399 = vld [vmem:[%s163 + $0x618] sm:$0xff]
        %v400 = vld [vmem:[%s163 + $0x620] sm:$0xff]
        %v401 = vld [vmem:[%s163 + $0x628] sm:$0xff]
        %v402 = vld [vmem:[%s163 + $0x630] sm:$0xff]
        %v403 = vld [vmem:[%s163 + $0x638] sm:$0xff]
        %v404 = vld [vmem:[%s163 + $0x640] sm:$0xff]
        %v405 = vld [vmem:[%s163 + $0x648] sm:$0xff]
        %v406 = vld [vmem:[%s163 + $0x650] sm:$0xff]
        %v407 = vld [vmem:[%s163 + $0x658] sm:$0xff]
        %v408 = vld [vmem:[%s163 + $0x660] sm:$0xff]
        %v409 = vld [vmem:[%s163 + $0x668] sm:$0xff]
        %v410 = vld [vmem:[%s163 + $0x670] sm:$0xff]
        %v411 = vld [vmem:[%s163 + $0x678] sm:$0xff]
        %v412 = vld [vmem:[%s163 + $0x680] sm:$0xff]
        %v413 = vld [vmem:[%s163 + $0x688] sm:$0xff]
        %v414 = vld [vmem:[%s163 + $0x690] sm:$0xff]
        %v415 = vld [vmem:[%s163 + $0x698] sm:$0xff]
        %v416 = vld [vmem:[%s163 + $0x6a0] sm:$0xff]
        %v417 = vld [vmem:[%s163 + $0x6a8] sm:$0xff]
        %v418 = vld [vmem:[%s163 + $0x6b0] sm:$0xff]
        %v419 = vld [vmem:[%s163 + $0x6b8] sm:$0xff]
        %v420 = vld [vmem:[%s163 + $0x6c0] sm:$0xff]
        %v421 = vld [vmem:[%s163 + $0x6c8] sm:$0xff]
        %v422 = vld [vmem:[%s163 + $0x6d0] sm:$0xff]
        %v423 = vld [vmem:[%s163 + $0x6d8] sm:$0xff]
        %v424 = vld [vmem:[%s163 + $0x6e0] sm:$0xff]
        %v425 = vld [vmem:[%s163 + $0x6e8] sm:$0xff]
        %v426 = vld [vmem:[%s163 + $0x6f0] sm:$0xff]
        %v427 = vld [vmem:[%s163 + $0x6f8] sm:$0xff]
        %v428 = vld [vmem:[%s163 + $0x700] sm:$0xff]
        %v429 = vld [vmem:[%s163 + $0x708] sm:$0xff]
        %v430 = vld [vmem:[%s163 + $0x710] sm:$0xff]
        %v431 = vld [vmem:[%s163 + $0x718] sm:$0xff]
        %v432 = vld [vmem:[%s163 + $0x720] sm:$0xff]
        %v433 = vld [vmem:[%s163 + $0x728] sm:$0xff]
        %v434 = vld [vmem:[%s163 + $0x730] sm:$0xff]
        %v435 = vld [vmem:[%s163 + $0x738] sm:$0xff]
        %v436 = vld [vmem:[%s163 + $0x740] sm:$0xff]
        %v437 = vld [vmem:[%s163 + $0x748] sm:$0xff]
        %v438 = vld [vmem:[%s163 + $0x750] sm:$0xff]
        %v439 = vld [vmem:[%s163 + $0x758] sm:$0xff]
        %v440 = vld [vmem:[%s163 + $0x760] sm:$0xff]
        %v441 = vld [vmem:[%s163 + $0x768] sm:$0xff]
        %v442 = vld [vmem:[%s163 + $0x770] sm:$0xff]
        %v443 = vld [vmem:[%s163 + $0x778] sm:$0xff]
        %v444 = vld [vmem:[%s163 + $0x780] sm:$0xff]
        %v445 = vld [vmem:[%s163 + $0x788] sm:$0xff]
        %v446 = vld [vmem:[%s163 + $0x790] sm:$0xff]
        %v447 = vld [vmem:[%s163 + $0x798] sm:$0xff]
        %v448 = vld [vmem:[%s163 + $0x7a0] sm:$0xff]
        %v449 = vld [vmem:[%s163 + $0x7a8] sm:$0xff]
        %v450 = vld [vmem:[%s163 + $0x7b0] sm:$0xff]
        %v451 = vld [vmem:[%s163 + $0x7b8] sm:$0xff]
        %v452 = vld [vmem:[%s163 + $0x7c0] sm:$0xff]
        %v453 = vld [vmem:[%s163 + $0x7c8] sm:$0xff]
        %v454 = vld [vmem:[%s163 + $0x7d0] sm:$0xff]
        %v455 = vld [vmem:[%s163 + $0x7d8] sm:$0xff]
        %v456 = vld [vmem:[%s163 + $0x7e0] sm:$0xff]
        %v457 = vld [vmem:[%s163 + $0x7e8] sm:$0xff]
        %v458 = vld [vmem:[%s163 + $0x7f0] sm:$0xff]
        %v459 = vld [vmem:[%s163 + $0x7f8] sm:$0xff]
        %v460 = vld [vmem:[%s163 + $0x800] sm:$0xff]
        %v461 = vld [vmem:[%s163 + $0x808] sm:$0xff]
        %v462 = vld [vmem:[%s163 + $0x810] sm:$0xff]
        %v463 = vld [vmem:[%s163 + $0x818] sm:$0xff]
        %v464 = vld [vmem:[%s163 + $0x820] sm:$0xff]
        %v465 = vld [vmem:[%s163 + $0x828] sm:$0xff]
        %v466 = vld [vmem:[%s163 + $0x830] sm:$0xff]
        %v467 = vld [vmem:[%s163 + $0x838] sm:$0xff]
        %v468 = vld [vmem:[%s163 + $0x840] sm:$0xff]
        %v469 = vld [vmem:[%s163 + $0x848] sm:$0xff]
        %v470 = vld [vmem:[%s163 + $0x850] sm:$0xff]
        %v471 = vld [vmem:[%s163 + $0x858] sm:$0xff]
        %v472 = vld [vmem:[%s163 + $0x860] sm:$0xff]
        %v473 = vld [vmem:[%s163 + $0x868] sm:$0xff]
        %v474 = vld [vmem:[%s163 + $0x870] sm:$0xff]
        %v475 = vld [vmem:[%s163 + $0x878] sm:$0xff]
        %v476 = vld [vmem:[%s163 + $0x880] sm:$0xff]
        %v477 = vld [vmem:[%s163 + $0x888] sm:$0xff]
        %v478 = vld [vmem:[%s163 + $0x890] sm:$0xff]
        %v479 = vld [vmem:[%s163 + $0x898] sm:$0xff]
        %v480 = vld [vmem:[%s163 + $0x8a0] sm:$0xff]
        %v481 = vld [vmem:[%s163 + $0x8a8] sm:$0xff]
        %v482 = vld [vmem:[%s163 + $0x8b0] sm:$0xff]
        %v483 = vld [vmem:[%s163 + $0x8b8] sm:$0xff]
        %v484 = vld [vmem:[%s163 + $0x8c0] sm:$0xff]
        %v485 = vld [vmem:[%s163 + $0x8c8] sm:$0xff]
        %v486 = vld [vmem:[%s163 + $0x8d0] sm:$0xff]
        %v487 = vld [vmem:[%s163 + $0x8d8] sm:$0xff]
        %v488 = vld [vmem:[%s163 + $0x8e0] sm:$0xff]
        %v489 = vld [vmem:[%s163 + $0x8e8] sm:$0xff]
        %v490 = vld [vmem:[%s163 + $0x8f0] sm:$0xff]
        %v491 = vld [vmem:[%s163 + $0x8f8] sm:$0xff]
        %v492 = vld [vmem:[%s163 + $0x900] sm:$0xff]
        %v493 = vld [vmem:[%s163 + $0x908] sm:$0xff]
        %v494 = vld [vmem:[%s163 + $0x910] sm:$0xff]
        %v495 = vld [vmem:[%s163 + $0x918] sm:$0xff]
        %v496 = vld [vmem:[%s163 + $0x920] sm:$0xff]
        %v497 = vld [vmem:[%s163 + $0x928] sm:$0xff]
        %v498 = vld [vmem:[%s163 + $0x930] sm:$0xff]
        %v499 = vld [vmem:[%s163 + $0x938] sm:$0xff]
        %v500 = vld [vmem:[%s163 + $0x940] sm:$0xff]
        %v501 = vld [vmem:[%s163 + $0x948] sm:$0xff]
        %v502 = vld [vmem:[%s163 + $0x950] sm:$0xff]
        %v503 = vld [vmem:[%s163 + $0x958] sm:$0xff]
        %v504 = vld [vmem:[%s163 + $0x960] sm:$0xff]
        %v505 = vld [vmem:[%s163 + $0x968] sm:$0xff]
        %v506 = vld [vmem:[%s163 + $0x970] sm:$0xff]
        %v507 = vld [vmem:[%s163 + $0x978] sm:$0xff]
        %v508 = vld [vmem:[%s163 + $0x980] sm:$0xff]
        %v509 = vld [vmem:[%s163 + $0x988] sm:$0xff]
        %v510 = vld [vmem:[%s163 + $0x990] sm:$0xff]
        %v511 = vld [vmem:[%s163 + $0x998] sm:$0xff]
        %v512 = vld [vmem:[%s163 + $0x9a0] sm:$0xff]
        %v513 = vld [vmem:[%s163 + $0x9a8] sm:$0xff]
        %v514 = vld [vmem:[%s163 + $0x9b0] sm:$0xff]
        %v515 = vld [vmem:[%s163 + $0x9b8] sm:$0xff]
        %v516 = vld [vmem:[%s163 + $0x9c0] sm:$0xff]
        %v517 = vld [vmem:[%s163 + $0x9c8] sm:$0xff]
        %v518 = vld [vmem:[%s163 + $0x9d0] sm:$0xff]
        %v519 = vld [vmem:[%s163 + $0x9d8] sm:$0xff]
        %v520 = vld [vmem:[%s163 + $0x9e0] sm:$0xff]
        %v521 = vld [vmem:[%s163 + $0x9e8] sm:$0xff]
        %v522 = vld [vmem:[%s163 + $0x9f0] sm:$0xff]
        %v523 = vld [vmem:[%s163 + $0x9f8] sm:$0xff]
        %v524 = vld [vmem:[%s163 + $0xa00] sm:$0xff]
        %v525 = vld [vmem:[%s163 + $0xa08] sm:$0xff]
        %v526 = vld [vmem:[%s163 + $0xa10] sm:$0xff]
        %v527 = vld [vmem:[%s163 + $0xa18] sm:$0xff]
        %v528 = vld [vmem:[%s163 + $0xa20] sm:$0xff]
        %v529 = vld [vmem:[%s163 + $0xa28] sm:$0xff]
        %v530 = vld [vmem:[%s163 + $0xa30] sm:$0xff]
        %v531 = vld [vmem:[%s163 + $0xa38] sm:$0xff]
        %v532 = vld [vmem:[%s163 + $0xa40] sm:$0xff]
        %v533 = vld [vmem:[%s163 + $0xa48] sm:$0xff]
        %v534 = vld [vmem:[%s163 + $0xa50] sm:$0xff]
        %v535 = vld [vmem:[%s163 + $0xa58] sm:$0xff]
        %v536 = vld [vmem:[%s163 + $0xa60] sm:$0xff]
        %v537 = vld [vmem:[%s163 + $0xa68] sm:$0xff]
        %v538 = vld [vmem:[%s163 + $0xa70] sm:$0xff]
        %v539 = vld [vmem:[%s163 + $0xa78] sm:$0xff]
        %v540 = vld [vmem:[%s163 + $0xa80] sm:$0xff]
        %v541 = vld [vmem:[%s163 + $0xa88] sm:$0xff]
        %v542 = vld [vmem:[%s163 + $0xa90] sm:$0xff]
        %v543 = vld [vmem:[%s163 + $0xa98] sm:$0xff]
        %v544 = vld [vmem:[%s163 + $0xaa0] sm:$0xff]
        %v545 = vld [vmem:[%s163 + $0xaa8] sm:$0xff]
        %v546 = vld [vmem:[%s163 + $0xab0] sm:$0xff]
        %v547 = vld [vmem:[%s163 + $0xab8] sm:$0xff]
        %v548 = vld [vmem:[%s163 + $0xac0] sm:$0xff]
        %v549 = vld [vmem:[%s163 + $0xac8] sm:$0xff]
        %v550 = vld [vmem:[%s163 + $0xad0] sm:$0xff]
        %v551 = vld [vmem:[%s163 + $0xad8] sm:$0xff]
        %v552 = vld [vmem:[%s163 + $0xae0] sm:$0xff]
        %v553 = vld [vmem:[%s163 + $0xae8] sm:$0xff]
        %v554 = vld [vmem:[%s163 + $0xaf0] sm:$0xff]
        %v555 = vld [vmem:[%s163 + $0xaf8] sm:$0xff]
        %v556 = vld [vmem:[%s163 + $0xb00] sm:$0xff]
        %v557 = vld [vmem:[%s163 + $0xb08] sm:$0xff]
        %v558 = vld [vmem:[%s163 + $0xb10] sm:$0xff]
        %v559 = vld [vmem:[%s163 + $0xb18] sm:$0xff]
        %v560 = vld [vmem:[%s163 + $0xb20] sm:$0xff]
        %v561 = vld [vmem:[%s163 + $0xb28] sm:$0xff]
        %v562 = vld [vmem:[%s163 + $0xb30] sm:$0xff]
        %v563 = vld [vmem:[%s163 + $0xb38] sm:$0xff]
        %v564 = vld [vmem:[%s163 + $0xb40] sm:$0xff]
        %v565 = vld [vmem:[%s163 + $0xb48] sm:$0xff]
        %v566 = vld [vmem:[%s163 + $0xb50] sm:$0xff]
        %v567 = vld [vmem:[%s163 + $0xb58] sm:$0xff]
        %v568 = vld [vmem:[%s163 + $0xb60] sm:$0xff]
        %v569 = vld [vmem:[%s163 + $0xb68] sm:$0xff]
        %v570 = vld [vmem:[%s163 + $0xb70] sm:$0xff]
        %v571 = vld [vmem:[%s163 + $0xb78] sm:$0xff]
        %v572 = vld [vmem:[%s163 + $0xb80] sm:$0xff]
        %v573 = vld [vmem:[%s163 + $0xb88] sm:$0xff]
        %v574 = vld [vmem:[%s163 + $0xb90] sm:$0xff]
        %v575 = vld [vmem:[%s163 + $0xb98] sm:$0xff]
        %v576 = vld [vmem:[%s163 + $0xba0] sm:$0xff]
        %v577 = vld [vmem:[%s163 + $0xba8] sm:$0xff]
        %v578 = vld [vmem:[%s163 + $0xbb0] sm:$0xff]
        %v579 = vld [vmem:[%s163 + $0xbb8] sm:$0xff]
        %v580 = vld [vmem:[%s163 + $0xbc0] sm:$0xff]
        %v581 = vld [vmem:[%s163 + $0xbc8] sm:$0xff]
        %v582 = vld [vmem:[%s163 + $0xbd0] sm:$0xff]
        %v583 = vld [vmem:[%s163 + $0xbd8] sm:$0xff]
        %v584 = vld [vmem:[%s163 + $0xbe0] sm:$0xff]
        %v585 = vld [vmem:[%s163 + $0xbe8] sm:$0xff]
        %v586 = vld [vmem:[%s163 + $0xbf0] sm:$0xff]
        %v587 = vld [vmem:[%s163 + $0xbf8] sm:$0xff]
        %v588 = vld [vmem:[%s163 + $0xc00] sm:$0xff]
        %v589 = vld [vmem:[%s163 + $0xc08] sm:$0xff]
        %v590 = vld [vmem:[%s163 + $0xc10] sm:$0xff]
        %v591 = vld [vmem:[%s163 + $0xc18] sm:$0xff]
        %v592 = vld [vmem:[%s163 + $0xc20] sm:$0xff]
        %v593 = vld [vmem:[%s163 + $0xc28] sm:$0xff]
        %vm594 = vcmask 916480
        %v596 = vsel %vm594, %v195, 0
        %v599 = vsel %vm594, %v197, 0
        %v602 = vsel %vm594, %v199, 0
        %v605 = vsel %vm594, %v201, 0
        %v608 = vsel %vm594, %v203, 0
        %610 = vmatprep.subr.mxu0 %v400
        %611 = vmatpush1.msra.mxu0 %v399
        %612 = vmatprep.subr.mxu0 %v387
        %613 = vmatpush1.msra.mxu0 %v386
        %614 = vmatprep.subr.mxu0 %v374
        %615 = vmatpush1.msra.mxu0 %v373
        %616 = vmatprep.subr.mxu0 %v361
        %617 = vmatpush1.msra.mxu0 %v360
        %618 = vmatprep.subr.mxu0 %v348
        %619 = vmatpush1.msra.mxu0 %v347
        %620 = vmatprep.subr.mxu0 %v335
        %621 = vmatpush1.msra.mxu0 %v334
        %622 = vmatprep.subr.mxu0 %v322
        %623 = vmatpush1.msra.mxu0 %v321
        %624 = vmatprep.subr.mxu0 %v309
        %625 = vmatpush1.msra.mxu0 %v308
        %626 = vmatprep.subr.mxu0 %v296
        %627 = vmatpush1.msra.mxu0 %v295
        %628 = vmatprep.subr.mxu0 %v283
        %629 = vmatpush1.msra.mxu0 %v282
        %630 = vmatprep.subr.mxu0 %v270
        %631 = vmatpush1.msra.mxu0 %v269
        %632 = vmatprep.subr.mxu0 %v257
        %633 = vmatpush1.msra.mxu0 %v256
        %634 = vmatprep.subr.mxu0 %v244
        %635 = vmatpush1.msra.mxu0 %v243
        %636 = vmatprep.subr.mxu0 %v231
        %637 = vmatpush1.msra.mxu0 %v230
        %638 = vmatprep.subr.mxu0 %v218
        %639 = vmatpush1.msra.mxu0 %v217
        %640 = vmatprep.subr.mxu0 %v205
        %641 = vmatpush1.msra.mxu0 %v204
        %642 = vmatprep.subr.mxu0 0.0
        %643 = vmatpush2.msra.mxu0 0.0
        %644 = vmatprep.subr.mxu0 0.0
        %645 = vmatpush2.msra.mxu0 0.0
        %646 = vmatprep.subr.mxu0 %v582
        %647 = vmatpush2.msra.mxu0 %v581
        %648 = vmatprep.subr.mxu0 %v569
        %649 = vmatpush2.msra.mxu0 %v568
        %650 = vmatprep.subr.mxu0 %v556
        %651 = vmatpush2.msra.mxu0 %v555
        %652 = vmatprep.subr.mxu0 %v543
        %653 = vmatpush2.msra.mxu0 %v542
        %654 = vmatprep.subr.mxu0 %v530
        %655 = vmatpush2.msra.mxu0 %v529
        %656 = vmatprep.subr.mxu0 %v517
        %657 = vmatpush2.msra.mxu0 %v516
        %658 = vmatprep.subr.mxu0 %v504
        %659 = vmatpush2.msra.mxu0 %v503
        %660 = vmatprep.subr.mxu0 %v491
        %661 = vmatpush2.msra.mxu0 %v490
        %662 = vmatprep.subr.mxu0 %v478
        %663 = vmatpush2.msra.mxu0 %v477
        %664 = vmatprep.subr.mxu0 %v465
        %665 = vmatpush2.msra.mxu0 %v464
        %666 = vmatprep.subr.mxu0 %v452
        %667 = vmatpush2.msra.mxu0 %v451
        %668 = vmatprep.subr.mxu0 %v439
        %669 = vmatpush2.msra.mxu0 %v438
        %670 = vmatprep.subr.mxu0 %v426
        %671 = vmatpush2.msra.mxu0 %v425
        %672 = vmatprep.subr.mxu0 %v413
        %673 = vmatpush2.msra.mxu0 %v412
        %674 = vmatprep.mubr.f32.mxu0 %v596
        %675 = vmatmul.mubr.f32.gmra.mxu0 %v194
        %v676 = vpop.f32.mrf.mxu0
        %v677 = vadd.f32 0.0, %v676
        %v678 = vpop.f32.mrf.mxu0
        %v679 = vadd.f32 0.0, %v678
        %680 = vmatprep.mubr.f32.mxu0 %v599
        %681 = vmatmul.mubr.f32.gmra.mxu0 %v196
        %v682 = vpop.f32.mrf.mxu0
        %v683 = vadd.f32 0.0, %v682
        %v684 = vpop.f32.mrf.mxu0
        %v685 = vadd.f32 0.0, %v684
        %686 = vmatprep.mubr.f32.mxu0 %v602
        %687 = vmatmul.mubr.f32.gmra.mxu0 %v198
        %v688 = vpop.f32.mrf.mxu0
        %v689 = vadd.f32 0.0, %v688
        %v690 = vpop.f32.mrf.mxu0
        %v691 = vadd.f32 0.0, %v690
        %692 = vmatprep.mubr.f32.mxu0 %v605
        %693 = vmatmul.mubr.f32.gmra.mxu0 %v200
        %v694 = vpop.f32.mrf.mxu0
        %v695 = vadd.f32 0.0, %v694
        %v696 = vpop.f32.mrf.mxu0
        %v697 = vadd.f32 0.0, %v696
        %698 = vmatprep.mubr.f32.mxu0 %v608
        %699 = vmatmul.mubr.f32.gmra.mxu0 %v202
        %v700 = vpop.f32.mrf.mxu0
        %v701 = vadd.f32 0.0, %v700
        %v702 = vpop.f32.mrf.mxu0
        %v703 = vadd.f32 0.0, %v702
        %704 = vdwg.mxu0
        %705 = vmatprep.subr.mxu0 %v402
        %706 = vmatpush1.msra.mxu0 %v401
        %707 = vmatprep.subr.mxu0 %v389
        %708 = vmatpush1.msra.mxu0 %v388
        %709 = vmatprep.subr.mxu0 %v376
        %710 = vmatpush1.msra.mxu0 %v375
        %711 = vmatprep.subr.mxu0 %v363
        %712 = vmatpush1.msra.mxu0 %v362
        %713 = vmatprep.subr.mxu0 %v350
        %714 = vmatpush1.msra.mxu0 %v349
        %715 = vmatprep.subr.mxu0 %v337
        %716 = vmatpush1.msra.mxu0 %v336
        %717 = vmatprep.subr.mxu0 %v324
        %718 = vmatpush1.msra.mxu0 %v323
        %719 = vmatprep.subr.mxu0 %v311
        %720 = vmatpush1.msra.mxu0 %v310
        %721 = vmatprep.subr.mxu0 %v298
        %722 = vmatpush1.msra.mxu0 %v297
        %723 = vmatprep.subr.mxu0 %v285
        %724 = vmatpush1.msra.mxu0 %v284
        %725 = vmatprep.subr.mxu0 %v272
        %726 = vmatpush1.msra.mxu0 %v271
        %727 = vmatprep.subr.mxu0 %v259
        %728 = vmatpush1.msra.mxu0 %v258
        %729 = vmatprep.subr.mxu0 %v246
        %730 = vmatpush1.msra.mxu0 %v245
        %731 = vmatprep.subr.mxu0 %v233
        %732 = vmatpush1.msra.mxu0 %v232
        %733 = vmatprep.subr.mxu0 %v220
        %734 = vmatpush1.msra.mxu0 %v219
        %735 = vmatprep.subr.mxu0 %v207
        %736 = vmatpush1.msra.mxu0 %v206
        %737 = vmatprep.subr.mxu0 0.0
        %738 = vmatpush2.msra.mxu0 0.0
        %739 = vmatprep.subr.mxu0 0.0
        %740 = vmatpush2.msra.mxu0 0.0
        %741 = vmatprep.subr.mxu0 %v584
        %742 = vmatpush2.msra.mxu0 %v583
        %743 = vmatprep.subr.mxu0 %v571
        %744 = vmatpush2.msra.mxu0 %v570
        %745 = vmatprep.subr.mxu0 %v558
        %746 = vmatpush2.msra.mxu0 %v557
        %747 = vmatprep.subr.mxu0 %v545
        %748 = vmatpush2.msra.mxu0 %v544
        %749 = vmatprep.subr.mxu0 %v532
        %750 = vmatpush2.msra.mxu0 %v531
        %751 = vmatprep.subr.mxu0 %v519
        %752 = vmatpush2.msra.mxu0 %v518
        %753 = vmatprep.subr.mxu0 %v506
        %754 = vmatpush2.msra.mxu0 %v505
        %755 = vmatprep.subr.mxu0 %v493
        %756 = vmatpush2.msra.mxu0 %v492
        %757 = vmatprep.subr.mxu0 %v480
        %758 = vmatpush2.msra.mxu0 %v479
        %759 = vmatprep.subr.mxu0 %v467
        %760 = vmatpush2.msra.mxu0 %v466
        %761 = vmatprep.subr.mxu0 %v454
        %762 = vmatpush2.msra.mxu0 %v453
        %763 = vmatprep.subr.mxu0 %v441
        %764 = vmatpush2.msra.mxu0 %v440
        %765 = vmatprep.subr.mxu0 %v428
        %766 = vmatpush2.msra.mxu0 %v427
        %767 = vmatprep.subr.mxu0 %v415
        %768 = vmatpush2.msra.mxu0 %v414
        %769 = vmatprep.mubr.f32.mxu0 %v596
        %770 = vmatmul.mubr.f32.gmra.mxu0 %v194
        %v771 = vpop.f32.mrf.mxu0
        %v772 = vadd.f32 0.0, %v771
        %v773 = vpop.f32.mrf.mxu0
        %v774 = vadd.f32 0.0, %v773
        %775 = vmatprep.mubr.f32.mxu0 %v599
        %776 = vmatmul.mubr.f32.gmra.mxu0 %v196
        %v777 = vpop.f32.mrf.mxu0
        %v778 = vadd.f32 0.0, %v777
        %v779 = vpop.f32.mrf.mxu0
        %v780 = vadd.f32 0.0, %v779
        %781 = vmatprep.mubr.f32.mxu0 %v602
        %782 = vmatmul.mubr.f32.gmra.mxu0 %v198
        %v783 = vpop.f32.mrf.mxu0
        %v784 = vadd.f32 0.0, %v783
        %v785 = vpop.f32.mrf.mxu0
        %v786 = vadd.f32 0.0, %v785
        %787 = vmatprep.mubr.f32.mxu0 %v605
        %788 = vmatmul.mubr.f32.gmra.mxu0 %v200
        %v789 = vpop.f32.mrf.mxu0
        %v790 = vadd.f32 0.0, %v789
        %v791 = vpop.f32.mrf.mxu0
        %v792 = vadd.f32 0.0, %v791
        %793 = vmatprep.mubr.f32.mxu0 %v608
        %794 = vmatmul.mubr.f32.gmra.mxu0 %v202
        %v795 = vpop.f32.mrf.mxu0
        %v796 = vadd.f32 0.0, %v795
        %v797 = vpop.f32.mrf.mxu0
        %v798 = vadd.f32 0.0, %v797
        %799 = vdwg.mxu0
        %800 = vmatprep.subr.mxu0 %v404
        %801 = vmatpush1.msra.mxu0 %v403
        %802 = vmatprep.subr.mxu0 %v391
        %803 = vmatpush1.msra.mxu0 %v390
        %804 = vmatprep.subr.mxu0 %v378
        %805 = vmatpush1.msra.mxu0 %v377
        %806 = vmatprep.subr.mxu0 %v365
        %807 = vmatpush1.msra.mxu0 %v364
        %808 = vmatprep.subr.mxu0 %v352
        %809 = vmatpush1.msra.mxu0 %v351
        %810 = vmatprep.subr.mxu0 %v339
        %811 = vmatpush1.msra.mxu0 %v338
        %812 = vmatprep.subr.mxu0 %v326
        %813 = vmatpush1.msra.mxu0 %v325
        %814 = vmatprep.subr.mxu0 %v313
        %815 = vmatpush1.msra.mxu0 %v312
        %816 = vmatprep.subr.mxu0 %v300
        %817 = vmatpush1.msra.mxu0 %v299
        %818 = vmatprep.subr.mxu0 %v287
        %819 = vmatpush1.msra.mxu0 %v286
        %820 = vmatprep.subr.mxu0 %v274
        %821 = vmatpush1.msra.mxu0 %v273
        %822 = vmatprep.subr.mxu0 %v261
        %823 = vmatpush1.msra.mxu0 %v260
        %824 = vmatprep.subr.mxu0 %v248
        %825 = vmatpush1.msra.mxu0 %v247
        %826 = vmatprep.subr.mxu0 %v235
        %827 = vmatpush1.msra.mxu0 %v234
        %828 = vmatprep.subr.mxu0 %v222
        %829 = vmatpush1.msra.mxu0 %v221
        %830 = vmatprep.subr.mxu0 %v209
        %831 = vmatpush1.msra.mxu0 %v208
        %832 = vmatprep.subr.mxu0 0.0
        %833 = vmatpush2.msra.mxu0 0.0
        %834 = vmatprep.subr.mxu0 0.0
        %835 = vmatpush2.msra.mxu0 0.0
        %836 = vmatprep.subr.mxu0 %v586
        %837 = vmatpush2.msra.mxu0 %v585
        %838 = vmatprep.subr.mxu0 %v573
        %839 = vmatpush2.msra.mxu0 %v572
        %840 = vmatprep.subr.mxu0 %v560
        %841 = vmatpush2.msra.mxu0 %v559
        %842 = vmatprep.subr.mxu0 %v547
        %843 = vmatpush2.msra.mxu0 %v546
        %844 = vmatprep.subr.mxu0 %v534
        %845 = vmatpush2.msra.mxu0 %v533
        %846 = vmatprep.subr.mxu0 %v521
        %847 = vmatpush2.msra.mxu0 %v520
        %848 = vmatprep.subr.mxu0 %v508
        %849 = vmatpush2.msra.mxu0 %v507
        %850 = vmatprep.subr.mxu0 %v495
        %851 = vmatpush2.msra.mxu0 %v494
        %852 = vmatprep.subr.mxu0 %v482
        %853 = vmatpush2.msra.mxu0 %v481
        %854 = vmatprep.subr.mxu0 %v469
        %855 = vmatpush2.msra.mxu0 %v468
        %856 = vmatprep.subr.mxu0 %v456
        %857 = vmatpush2.msra.mxu0 %v455
        %858 = vmatprep.subr.mxu0 %v443
        %859 = vmatpush2.msra.mxu0 %v442
        %860 = vmatprep.subr.mxu0 %v430
        %861 = vmatpush2.msra.mxu0 %v429
        %862 = vmatprep.subr.mxu0 %v417
        %863 = vmatpush2.msra.mxu0 %v416
        %864 = vmatprep.mubr.f32.mxu0 %v596
        %865 = vmatmul.mubr.f32.gmra.mxu0 %v194
        %v866 = vpop.f32.mrf.mxu0
        %v867 = vadd.f32 0.0, %v866
        %v868 = vpop.f32.mrf.mxu0
        %v869 = vadd.f32 0.0, %v868
        %870 = vmatprep.mubr.f32.mxu0 %v599
        %871 = vmatmul.mubr.f32.gmra.mxu0 %v196
        %v872 = vpop.f32.mrf.mxu0
        %v873 = vadd.f32 0.0, %v872
        %v874 = vpop.f32.mrf.mxu0
        %v875 = vadd.f32 0.0, %v874
        %876 = vmatprep.mubr.f32.mxu0 %v602
        %877 = vmatmul.mubr.f32.gmra.mxu0 %v198
        %v878 = vpop.f32.mrf.mxu0
        %v879 = vadd.f32 0.0, %v878
        %v880 = vpop.f32.mrf.mxu0
        %v881 = vadd.f32 0.0, %v880
        %882 = vmatprep.mubr.f32.mxu0 %v605
        %883 = vmatmul.mubr.f32.gmra.mxu0 %v200
        %v884 = vpop.f32.mrf.mxu0
        %v885 = vadd.f32 0.0, %v884
        %v886 = vpop.f32.mrf.mxu0
        %v887 = vadd.f32 0.0, %v886
        %888 = vmatprep.mubr.f32.mxu0 %v608
        %889 = vmatmul.mubr.f32.gmra.mxu0 %v202
        %v890 = vpop.f32.mrf.mxu0
        %v891 = vadd.f32 0.0, %v890
        %v892 = vpop.f32.mrf.mxu0
        %v893 = vadd.f32 0.0, %v892
        %894 = vdwg.mxu0
        %895 = vmatprep.subr.mxu0 %v406
        %896 = vmatpush1.msra.mxu0 %v405
        %897 = vmatprep.subr.mxu0 %v393
        %898 = vmatpush1.msra.mxu0 %v392
        %899 = vmatprep.subr.mxu0 %v380
        %900 = vmatpush1.msra.mxu0 %v379
        %901 = vmatprep.subr.mxu0 %v367
        %902 = vmatpush1.msra.mxu0 %v366
        %903 = vmatprep.subr.mxu0 %v354
        %904 = vmatpush1.msra.mxu0 %v353
        %905 = vmatprep.subr.mxu0 %v341
        %906 = vmatpush1.msra.mxu0 %v340
        %907 = vmatprep.subr.mxu0 %v328
        %908 = vmatpush1.msra.mxu0 %v327
        %909 = vmatprep.subr.mxu0 %v315
        %910 = vmatpush1.msra.mxu0 %v314
        %911 = vmatprep.subr.mxu0 %v302
        %912 = vmatpush1.msra.mxu0 %v301
        %913 = vmatprep.subr.mxu0 %v289
        %914 = vmatpush1.msra.mxu0 %v288
        %915 = vmatprep.subr.mxu0 %v276
        %916 = vmatpush1.msra.mxu0 %v275
        %917 = vmatprep.subr.mxu0 %v263
        %918 = vmatpush1.msra.mxu0 %v262
        %919 = vmatprep.subr.mxu0 %v250
        %920 = vmatpush1.msra.mxu0 %v249
        %921 = vmatprep.subr.mxu0 %v237
        %922 = vmatpush1.msra.mxu0 %v236
        %923 = vmatprep.subr.mxu0 %v224
        %924 = vmatpush1.msra.mxu0 %v223
        %925 = vmatprep.subr.mxu0 %v211
        %926 = vmatpush1.msra.mxu0 %v210
        %927 = vmatprep.subr.mxu0 0.0
        %928 = vmatpush2.msra.mxu0 0.0
        %929 = vmatprep.subr.mxu0 0.0
        %930 = vmatpush2.msra.mxu0 0.0
        %931 = vmatprep.subr.mxu0 %v588
        %932 = vmatpush2.msra.mxu0 %v587
        %933 = vmatprep.subr.mxu0 %v575
        %934 = vmatpush2.msra.mxu0 %v574
        %935 = vmatprep.subr.mxu0 %v562
        %936 = vmatpush2.msra.mxu0 %v561
        %937 = vmatprep.subr.mxu0 %v549
        %938 = vmatpush2.msra.mxu0 %v548
        %939 = vmatprep.subr.mxu0 %v536
        %940 = vmatpush2.msra.mxu0 %v535
        %941 = vmatprep.subr.mxu0 %v523
        %942 = vmatpush2.msra.mxu0 %v522
        %943 = vmatprep.subr.mxu0 %v510
        %944 = vmatpush2.msra.mxu0 %v509
        %945 = vmatprep.subr.mxu0 %v497
        %946 = vmatpush2.msra.mxu0 %v496
        %947 = vmatprep.subr.mxu0 %v484
        %948 = vmatpush2.msra.mxu0 %v483
        %949 = vmatprep.subr.mxu0 %v471
        %950 = vmatpush2.msra.mxu0 %v470
        %951 = vmatprep.subr.mxu0 %v458
        %952 = vmatpush2.msra.mxu0 %v457
        %953 = vmatprep.subr.mxu0 %v445
        %954 = vmatpush2.msra.mxu0 %v444
        %955 = vmatprep.subr.mxu0 %v432
        %956 = vmatpush2.msra.mxu0 %v431
        %957 = vmatprep.subr.mxu0 %v419
        %958 = vmatpush2.msra.mxu0 %v418
        %959 = vmatprep.mubr.f32.mxu0 %v596
        %960 = vmatmul.mubr.f32.gmra.mxu0 %v194
        %v961 = vpop.f32.mrf.mxu0
        %v962 = vadd.f32 0.0, %v961
        %v963 = vpop.f32.mrf.mxu0
        %v964 = vadd.f32 0.0, %v963
        %965 = vmatprep.mubr.f32.mxu0 %v599
        %966 = vmatmul.mubr.f32.gmra.mxu0 %v196
        %v967 = vpop.f32.mrf.mxu0
        %v968 = vadd.f32 0.0, %v967
        %v969 = vpop.f32.mrf.mxu0
        %v970 = vadd.f32 0.0, %v969
        %971 = vmatprep.mubr.f32.mxu0 %v602
        %972 = vmatmul.mubr.f32.gmra.mxu0 %v198
        %v973 = vpop.f32.mrf.mxu0
        %v974 = vadd.f32 0.0, %v973
        %v975 = vpop.f32.mrf.mxu0
        %v976 = vadd.f32 0.0, %v975
        %977 = vmatprep.mubr.f32.mxu0 %v605
        %978 = vmatmul.mubr.f32.gmra.mxu0 %v200
        %v979 = vpop.f32.mrf.mxu0
        %v980 = vadd.f32 0.0, %v979
        %v981 = vpop.f32.mrf.mxu0
        %v982 = vadd.f32 0.0, %v981
        %983 = vmatprep.mubr.f32.mxu0 %v608
        %984 = vmatmul.mubr.f32.gmra.mxu0 %v202
        %v985 = vpop.f32.mrf.mxu0
        %v986 = vadd.f32 0.0, %v985
        %v987 = vpop.f32.mrf.mxu0
        %v988 = vadd.f32 0.0, %v987
        %989 = vdwg.mxu0
        %990 = vmatprep.subr.mxu0 %v408
        %991 = vmatpush1.msra.mxu0 %v407
        %992 = vmatprep.subr.mxu0 %v395
        %993 = vmatpush1.msra.mxu0 %v394
        %994 = vmatprep.subr.mxu0 %v382
        %995 = vmatpush1.msra.mxu0 %v381
        %996 = vmatprep.subr.mxu0 %v369
        %997 = vmatpush1.msra.mxu0 %v368
        %998 = vmatprep.subr.mxu0 %v356
        %999 = vmatpush1.msra.mxu0 %v355
        %1000 = vmatprep.subr.mxu0 %v343
        %1001 = vmatpush1.msra.mxu0 %v342
        %1002 = vmatprep.subr.mxu0 %v330
        %1003 = vmatpush1.msra.mxu0 %v329
        %1004 = vmatprep.subr.mxu0 %v317
        %1005 = vmatpush1.msra.mxu0 %v316
        %1006 = vmatprep.subr.mxu0 %v304
        %1007 = vmatpush1.msra.mxu0 %v303
        %1008 = vmatprep.subr.mxu0 %v291
        %1009 = vmatpush1.msra.mxu0 %v290
        %1010 = vmatprep.subr.mxu0 %v278
        %1011 = vmatpush1.msra.mxu0 %v277
        %1012 = vmatprep.subr.mxu0 %v265
        %1013 = vmatpush1.msra.mxu0 %v264
        %1014 = vmatprep.subr.mxu0 %v252
        %1015 = vmatpush1.msra.mxu0 %v251
        %1016 = vmatprep.subr.mxu0 %v239
        %1017 = vmatpush1.msra.mxu0 %v238
        %1018 = vmatprep.subr.mxu0 %v226
        %1019 = vmatpush1.msra.mxu0 %v225
        %1020 = vmatprep.subr.mxu0 %v213
        %1021 = vmatpush1.msra.mxu0 %v212
        %1022 = vmatprep.subr.mxu0 0.0
        %1023 = vmatpush2.msra.mxu0 0.0
        %1024 = vmatprep.subr.mxu0 0.0
        %1025 = vmatpush2.msra.mxu0 0.0
        %1026 = vmatprep.subr.mxu0 %v590
        %1027 = vmatpush2.msra.mxu0 %v589
        %1028 = vmatprep.subr.mxu0 %v577
        %1029 = vmatpush2.msra.mxu0 %v576
        %1030 = vmatprep.subr.mxu0 %v564
        %1031 = vmatpush2.msra.mxu0 %v563
        %1032 = vmatprep.subr.mxu0 %v551
        %1033 = vmatpush2.msra.mxu0 %v550
        %1034 = vmatprep.subr.mxu0 %v538
        %1035 = vmatpush2.msra.mxu0 %v537
        %1036 = vmatprep.subr.mxu0 %v525
        %1037 = vmatpush2.msra.mxu0 %v524
        %1038 = vmatprep.subr.mxu0 %v512
        %1039 = vmatpush2.msra.mxu0 %v511
        %1040 = vmatprep.subr.mxu0 %v499
        %1041 = vmatpush2.msra.mxu0 %v498
        %1042 = vmatprep.subr.mxu0 %v486
        %1043 = vmatpush2.msra.mxu0 %v485
        %1044 = vmatprep.subr.mxu0 %v473
        %1045 = vmatpush2.msra.mxu0 %v472
        %1046 = vmatprep.subr.mxu0 %v460
        %1047 = vmatpush2.msra.mxu0 %v459
        %1048 = vmatprep.subr.mxu0 %v447
        %1049 = vmatpush2.msra.mxu0 %v446
        %1050 = vmatprep.subr.mxu0 %v434
        %1051 = vmatpush2.msra.mxu0 %v433
        %1052 = vmatprep.subr.mxu0 %v421
        %1053 = vmatpush2.msra.mxu0 %v420
        %1054 = vmatprep.mubr.f32.mxu0 %v596
        %1055 = vmatmul.mubr.f32.gmra.mxu0 %v194
        %v1056 = vpop.f32.mrf.mxu0
        %v1057 = vadd.f32 0.0, %v1056
        %v1058 = vpop.f32.mrf.mxu0
        %v1059 = vadd.f32 0.0, %v1058
        %1060 = vmatprep.mubr.f32.mxu0 %v599
        %1061 = vmatmul.mubr.f32.gmra.mxu0 %v196
        %v1062 = vpop.f32.mrf.mxu0
        %v1063 = vadd.f32 0.0, %v1062
        %v1064 = vpop.f32.mrf.mxu0
        %v1065 = vadd.f32 0.0, %v1064
        %1066 = vmatprep.mubr.f32.mxu0 %v602
        %1067 = vmatmul.mubr.f32.gmra.mxu0 %v198
        %v1068 = vpop.f32.mrf.mxu0
        %v1069 = vadd.f32 0.0, %v1068
        %v1070 = vpop.f32.mrf.mxu0
        %v1071 = vadd.f32 0.0, %v1070
        %1072 = vmatprep.mubr.f32.mxu0 %v605
        %1073 = vmatmul.mubr.f32.gmra.mxu0 %v200
        %v1074 = vpop.f32.mrf.mxu0
        %v1075 = vadd.f32 0.0, %v1074
        %v1076 = vpop.f32.mrf.mxu0
        %v1077 = vadd.f32 0.0, %v1076
        %1078 = vmatprep.mubr.f32.mxu0 %v608
        %1079 = vmatmul.mubr.f32.gmra.mxu0 %v202
        %v1080 = vpop.f32.mrf.mxu0
        %v1081 = vadd.f32 0.0, %v1080
        %v1082 = vpop.f32.mrf.mxu0
        %v1083 = vadd.f32 0.0, %v1082
        %1084 = vdwg.mxu0
        %1085 = vmatprep.subr.mxu0 %v410
        %1086 = vmatpush1.msra.mxu0 %v409
        %1087 = vmatprep.subr.mxu0 %v397
        %1088 = vmatpush1.msra.mxu0 %v396
        %1089 = vmatprep.subr.mxu0 %v384
        %1090 = vmatpush1.msra.mxu0 %v383
        %1091 = vmatprep.subr.mxu0 %v371
        %1092 = vmatpush1.msra.mxu0 %v370
        %1093 = vmatprep.subr.mxu0 %v358
        %1094 = vmatpush1.msra.mxu0 %v357
        %1095 = vmatprep.subr.mxu0 %v345
        %1096 = vmatpush1.msra.mxu0 %v344
        %1097 = vmatprep.subr.mxu0 %v332
        %1098 = vmatpush1.msra.mxu0 %v331
        %1099 = vmatprep.subr.mxu0 %v319
        %1100 = vmatpush1.msra.mxu0 %v318
        %1101 = vmatprep.subr.mxu0 %v306
        %1102 = vmatpush1.msra.mxu0 %v305
        %1103 = vmatprep.subr.mxu0 %v293
        %1104 = vmatpush1.msra.mxu0 %v292
        %1105 = vmatprep.subr.mxu0 %v280
        %1106 = vmatpush1.msra.mxu0 %v279
        %1107 = vmatprep.subr.mxu0 %v267
        %1108 = vmatpush1.msra.mxu0 %v266
        %1109 = vmatprep.subr.mxu0 %v254
        %1110 = vmatpush1.msra.mxu0 %v253
        %1111 = vmatprep.subr.mxu0 %v241
        %1112 = vmatpush1.msra.mxu0 %v240
        %1113 = vmatprep.subr.mxu0 %v228
        %1114 = vmatpush1.msra.mxu0 %v227
        %1115 = vmatprep.subr.mxu0 %v215
        %1116 = vmatpush1.msra.mxu0 %v214
        %1117 = vmatprep.subr.mxu0 0.0
        %1118 = vmatpush2.msra.mxu0 0.0
        %1119 = vmatprep.subr.mxu0 0.0
        %1120 = vmatpush2.msra.mxu0 0.0
        %1121 = vmatprep.subr.mxu0 %v592
        %1122 = vmatpush2.msra.mxu0 %v591
        %1123 = vmatprep.subr.mxu0 %v579
        %1124 = vmatpush2.msra.mxu0 %v578
        %1125 = vmatprep.subr.mxu0 %v566
        %1126 = vmatpush2.msra.mxu0 %v565
        %1127 = vmatprep.subr.mxu0 %v553
        %1128 = vmatpush2.msra.mxu0 %v552
        %1129 = vmatprep.subr.mxu0 %v540
        %1130 = vmatpush2.msra.mxu0 %v539
        %1131 = vmatprep.subr.mxu0 %v527
        %1132 = vmatpush2.msra.mxu0 %v526
        %1133 = vmatprep.subr.mxu0 %v514
        %1134 = vmatpush2.msra.mxu0 %v513
        %1135 = vmatprep.subr.mxu0 %v501
        %1136 = vmatpush2.msra.mxu0 %v500
        %1137 = vmatprep.subr.mxu0 %v488
        %1138 = vmatpush2.msra.mxu0 %v487
        %1139 = vmatprep.subr.mxu0 %v475
        %1140 = vmatpush2.msra.mxu0 %v474
        %1141 = vmatprep.subr.mxu0 %v462
        %1142 = vmatpush2.msra.mxu0 %v461
        %1143 = vmatprep.subr.mxu0 %v449
        %1144 = vmatpush2.msra.mxu0 %v448
        %1145 = vmatprep.subr.mxu0 %v436
        %1146 = vmatpush2.msra.mxu0 %v435
        %1147 = vmatprep.subr.mxu0 %v423
        %1148 = vmatpush2.msra.mxu0 %v422
        %1149 = vmatprep.mubr.f32.mxu0 %v596
        %1150 = vmatmul.mubr.f32.gmra.mxu0 %v194
        %v1151 = vpop.f32.mrf.mxu0
        %v1152 = vadd.f32 0.0, %v1151
        %v1153 = vpop.f32.mrf.mxu0
        %v1154 = vadd.f32 0.0, %v1153
        %1155 = vmatprep.mubr.f32.mxu0 %v599
        %1156 = vmatmul.mubr.f32.gmra.mxu0 %v196
        %v1157 = vpop.f32.mrf.mxu0
        %v1158 = vadd.f32 0.0, %v1157
        %v1159 = vpop.f32.mrf.mxu0
        %v1160 = vadd.f32 0.0, %v1159
        %1161 = vmatprep.mubr.f32.mxu0 %v602
        %1162 = vmatmul.mubr.f32.gmra.mxu0 %v198
        %v1163 = vpop.f32.mrf.mxu0
        %v1164 = vadd.f32 0.0, %v1163
        %v1165 = vpop.f32.mrf.mxu0
        %v1166 = vadd.f32 0.0, %v1165
        %1167 = vmatprep.mubr.f32.mxu0 %v605
        %1168 = vmatmul.mubr.f32.gmra.mxu0 %v200
        %v1169 = vpop.f32.mrf.mxu0
        %v1170 = vadd.f32 0.0, %v1169
        %v1171 = vpop.f32.mrf.mxu0
        %v1172 = vadd.f32 0.0, %v1171
        %1173 = vmatprep.mubr.f32.mxu0 %v608
        %1174 = vmatmul.mubr.f32.gmra.mxu0 %v202
        %v1175 = vpop.f32.mrf.mxu0
        %v1176 = vadd.f32 0.0, %v1175
        %v1177 = vpop.f32.mrf.mxu0
        %v1178 = vadd.f32 0.0, %v1177
        %1179 = vdwg.mxu0
        %1180 = vmatprep.subr.mxu0 0.0
        %1181 = vmatpush1.msra.mxu0 %v411
        %1182 = vmatprep.subr.mxu0 0.0
        %1183 = vmatpush1.msra.mxu0 %v398
        %1184 = vmatprep.subr.mxu0 0.0
        %1185 = vmatpush1.msra.mxu0 %v385
        %1186 = vmatprep.subr.mxu0 0.0
        %1187 = vmatpush1.msra.mxu0 %v372
        %1188 = vmatprep.subr.mxu0 0.0
        %1189 = vmatpush1.msra.mxu0 %v359
        %1190 = vmatprep.subr.mxu0 0.0
        %1191 = vmatpush1.msra.mxu0 %v346
        %1192 = vmatprep.subr.mxu0 0.0
        %1193 = vmatpush1.msra.mxu0 %v333
        %1194 = vmatprep.subr.mxu0 0.0
        %1195 = vmatpush1.msra.mxu0 %v320
        %1196 = vmatprep.subr.mxu0 0.0
        %1197 = vmatpush1.msra.mxu0 %v307
        %1198 = vmatprep.subr.mxu0 0.0
        %1199 = vmatpush1.msra.mxu0 %v294
        %1200 = vmatprep.subr.mxu0 0.0
        %1201 = vmatpush1.msra.mxu0 %v281
        %1202 = vmatprep.subr.mxu0 0.0
        %1203 = vmatpush1.msra.mxu0 %v268
        %1204 = vmatprep.subr.mxu0 0.0
        %1205 = vmatpush1.msra.mxu0 %v255
        %1206 = vmatprep.subr.mxu0 0.0
        %1207 = vmatpush1.msra.mxu0 %v242
        %1208 = vmatprep.subr.mxu0 0.0
        %1209 = vmatpush1.msra.mxu0 %v229
        %1210 = vmatprep.subr.mxu0 0.0
        %1211 = vmatpush1.msra.mxu0 %v216
        %1212 = vmatprep.subr.mxu0 0.0
        %1213 = vmatpush2.msra.mxu0 0.0
        %1214 = vmatprep.subr.mxu0 0.0
        %1215 = vmatpush2.msra.mxu0 0.0
        %1216 = vmatprep.subr.mxu0 0.0
        %1217 = vmatpush2.msra.mxu0 %v593
        %1218 = vmatprep.subr.mxu0 0.0
        %1219 = vmatpush2.msra.mxu0 %v580
        %1220 = vmatprep.subr.mxu0 0.0
        %1221 = vmatpush2.msra.mxu0 %v567
        %1222 = vmatprep.subr.mxu0 0.0
        %1223 = vmatpush2.msra.mxu0 %v554
        %1224 = vmatprep.subr.mxu0 0.0
        %1225 = vmatpush2.msra.mxu0 %v541
        %1226 = vmatprep.subr.mxu0 0.0
        %1227 = vmatpush2.msra.mxu0 %v528
        %1228 = vmatprep.subr.mxu0 0.0
        %1229 = vmatpush2.msra.mxu0 %v515
        %1230 = vmatprep.subr.mxu0 0.0
        %1231 = vmatpush2.msra.mxu0 %v502
        %1232 = vmatprep.subr.mxu0 0.0
        %1233 = vmatpush2.msra.mxu0 %v489
        %1234 = vmatprep.subr.mxu0 0.0
        %1235 = vmatpush2.msra.mxu0 %v476
        %1236 = vmatprep.subr.mxu0 0.0
        %1237 = vmatpush2.msra.mxu0 %v463
        %1238 = vmatprep.subr.mxu0 0.0
        %1239 = vmatpush2.msra.mxu0 %v450
        %1240 = vmatprep.subr.mxu0 0.0
        %1241 = vmatpush2.msra.mxu0 %v437
        %1242 = vmatprep.subr.mxu0 0.0
        %1243 = vmatpush2.msra.mxu0 %v424
        %1244 = vmatprep.mubr.f32.mxu0 %v596
        %1245 = vmatmul.mubr.f32.gmra.mxu0 %v194
        %v1246 = vpop.f32.mrf.mxu0
        %v1247 = vadd.f32 0.0, %v1246
        %v1248 = vpop.f32.mrf.mxu0
        %1249 = vmatprep.mubr.f32.mxu0 %v599
        %1250 = vmatmul.mubr.f32.gmra.mxu0 %v196
        %v1251 = vpop.f32.mrf.mxu0
        %v1252 = vadd.f32 0.0, %v1251
        %v1253 = vpop.f32.mrf.mxu0
        %1254 = vmatprep.mubr.f32.mxu0 %v602
        %1255 = vmatmul.mubr.f32.gmra.mxu0 %v198
        %v1256 = vpop.f32.mrf.mxu0
        %v1257 = vadd.f32 0.0, %v1256
        %v1258 = vpop.f32.mrf.mxu0
        %1259 = vmatprep.mubr.f32.mxu0 %v605
        %1260 = vmatmul.mubr.f32.gmra.mxu0 %v200
        %v1261 = vpop.f32.mrf.mxu0
        %v1262 = vadd.f32 0.0, %v1261
        %v1263 = vpop.f32.mrf.mxu0
        %1264 = vmatprep.mubr.f32.mxu0 %v608
        %1265 = vmatmul.mubr.f32.gmra.mxu0 %v202
        %v1266 = vpop.f32.mrf.mxu0
        %v1267 = vadd.f32 0.0, %v1266
        %v1268 = vpop.f32.mrf.mxu0
        %1269 = vdwg.mxu0
        %1270 = vst [vmem:[%s183] sm:$0xff] %v677
        %1271 = vst [vmem:[%s183 + $0x8] sm:$0xff] %v679
        %1272 = vst [vmem:[%s183 + $0x10] sm:$0xff] %v772
        %1273 = vst [vmem:[%s183 + $0x18] sm:$0xff] %v774
        %1274 = vst [vmem:[%s183 + $0x20] sm:$0xff] %v867
        %1275 = vst [vmem:[%s183 + $0x28] sm:$0xff] %v869
        %1276 = vst [vmem:[%s183 + $0x30] sm:$0xff] %v962
        %1277 = vst [vmem:[%s183 + $0x38] sm:$0xff] %v964
        %1278 = vst [vmem:[%s183 + $0x40] sm:$0xff] %v1057
        %1279 = vst [vmem:[%s183 + $0x48] sm:$0xff] %v1059
        %1280 = vst [vmem:[%s183 + $0x50] sm:$0xff] %v1152
        %1281 = vst [vmem:[%s183 + $0x58] sm:$0xff] %v1154
        %1282 = vst [vmem:[%s183 + $0x60] sm:$0xff] %v1247
        %1283 = vst [vmem:[%s183 + $0x68] sm:$0xff] %v683
        %1284 = vst [vmem:[%s183 + $0x70] sm:$0xff] %v685
        %1285 = vst [vmem:[%s183 + $0x78] sm:$0xff] %v778
        %1286 = vst [vmem:[%s183 + $0x80] sm:$0xff] %v780
        %1287 = vst [vmem:[%s183 + $0x88] sm:$0xff] %v873
        %1288 = vst [vmem:[%s183 + $0x90] sm:$0xff] %v875
        %1289 = vst [vmem:[%s183 + $0x98] sm:$0xff] %v968
        %1290 = vst [vmem:[%s183 + $0xa0] sm:$0xff] %v970
        %1291 = vst [vmem:[%s183 + $0xa8] sm:$0xff] %v1063
        %1292 = vst [vmem:[%s183 + $0xb0] sm:$0xff] %v1065
        %1293 = vst [vmem:[%s183 + $0xb8] sm:$0xff] %v1158
        %1294 = vst [vmem:[%s183 + $0xc0] sm:$0xff] %v1160
        %1295 = vst [vmem:[%s183 + $0xc8] sm:$0xff] %v1252
        %1296 = vst [vmem:[%s183 + $0xd0] sm:$0xff] %v689
        %1297 = vst [vmem:[%s183 + $0xd8] sm:$0xff] %v691
        %1298 = vst [vmem:[%s183 + $0xe0] sm:$0xff] %v784
        %1299 = vst [vmem:[%s183 + $0xe8] sm:$0xff] %v786
        %1300 = vst [vmem:[%s183 + $0xf0] sm:$0xff] %v879
        %1301 = vst [vmem:[%s183 + $0xf8] sm:$0xff] %v881
        %1302 = vst [vmem:[%s183 + $0x100] sm:$0xff] %v974
        %1303 = vst [vmem:[%s183 + $0x108] sm:$0xff] %v976
        %1304 = vst [vmem:[%s183 + $0x110] sm:$0xff] %v1069
        %1305 = vst [vmem:[%s183 + $0x118] sm:$0xff] %v1071
        %1306 = vst [vmem:[%s183 + $0x120] sm:$0xff] %v1164
        %1307 = vst [vmem:[%s183 + $0x128] sm:$0xff] %v1166
        %1308 = vst [vmem:[%s183 + $0x130] sm:$0xff] %v1257
        %1309 = vst [vmem:[%s183 + $0x138] sm:$0xff] %v695
        %1310 = vst [vmem:[%s183 + $0x140] sm:$0xff] %v697
        %1311 = vst [vmem:[%s183 + $0x148] sm:$0xff] %v790
        %1312 = vst [vmem:[%s183 + $0x150] sm:$0xff] %v792
        %1313 = vst [vmem:[%s183 + $0x158] sm:$0xff] %v885
        %1314 = vst [vmem:[%s183 + $0x160] sm:$0xff] %v887
        %1315 = vst [vmem:[%s183 + $0x168] sm:$0xff] %v980
        %1316 = vst [vmem:[%s183 + $0x170] sm:$0xff] %v982
        %1317 = vst [vmem:[%s183 + $0x178] sm:$0xff] %v1075
        %1318 = vst [vmem:[%s183 + $0x180] sm:$0xff] %v1077
        %1319 = vst [vmem:[%s183 + $0x188] sm:$0xff] %v1170
        %1320 = vst [vmem:[%s183 + $0x190] sm:$0xff] %v1172
        %1321 = vst [vmem:[%s183 + $0x198] sm:$0xff] %v1262
        %1322 = vst [vmem:[%s183 + $0x1a0] sm:$0xff] %v701
        %1323 = vst [vmem:[%s183 + $0x1a8] sm:$0xff] %v703
        %1324 = vst [vmem:[%s183 + $0x1b0] sm:$0xff] %v796
        %1325 = vst [vmem:[%s183 + $0x1b8] sm:$0xff] %v798
        %1326 = vst [vmem:[%s183 + $0x1c0] sm:$0xff] %v891
        %1327 = vst [vmem:[%s183 + $0x1c8] sm:$0xff] %v893
        %1328 = vst [vmem:[%s183 + $0x1d0] sm:$0xff] %v986
        %1329 = vst [vmem:[%s183 + $0x1d8] sm:$0xff] %v988
        %1330 = vst [vmem:[%s183 + $0x1e0] sm:$0xff] %v1081
        %1331 = vst [vmem:[%s183 + $0x1e8] sm:$0xff] %v1083
        %1332 = vst [vmem:[%s183 + $0x1f0] sm:$0xff] %v1176
        %1333 = vst [vmem:[%s183 + $0x1f8] sm:$0xff] %v1178
        %1334 = vst [vmem:[%s183 + $0x200] sm:$0xff] %v1267
        %s1335 = sand.u32 %s75, 1
        %s1336 = scalar_lea.sflag [#allocation4], %s1335
        %s1337 = sand.u32 %s75, 1
        %s1338 = smul.addr %s1337, 520
        %s1339 = scalar_lea.vmem [#allocation7], %s1338
        // Predicated region
        $region37: #{tpu_custom_call.1} parent=27 // pred_check
          %p1340 = pneg %p85
        $region38: #{tpu_custom_call.1} parent=27 // pred_check_branch
          %1342 = sbr.rel (%p1340) target = $region40
        $region39: #{tpu_custom_call.1} parent=27 // pred_region
          %s1343 = smul.u32 13, %s20
          %s1344 = ssub.s32 25, %s1343
          %p1345 = scmp.lt.s32.totalorder %s1344, 13
          %s1346 = scalar_select %p1345, %s1344, 13
          %s1347 = smul.u32 640, %s1346
          %s1349 = ssub.s32 8320, %s1347
          %1350 = vsyncadd %s1336, %s1349
          %p1351 = scmp.ne.s32.totalorder 0, %s1347
          %s1352 = smul.addr %s1343, 128
          %s1353 = scalar_lea.hbm %s2, %s1352
          %s1354 = smul.u32 %s1346, 8
          %s1355 = smul.u32 %s1354, 5
          %s1356 = sshll.u32 %s1339, 4
          %s1357 = int_to_ptr.vmem [resolvable:$true] %s1356
          %s1358 = sshll.u32 %s1355, 4
          %1362 = dma.vmem_to_hbm [thread:$0]  (%p1351), %s1357, %s1358, %s1353, %s1336, 1664, 3200, %s1354
        $region40: #{tpu_custom_call.1} parent=27 // pred_fallthru
          _
      $region28: #{tpu_custom_call.1} parent=5 // pred_fallthru
        _
      %p1363 = scmp.le.s32.totalorder 2, %s15
      // Predicated region
      $region41: #{tpu_custom_call.1} parent=5 // pred_check
        %p1364 = pneg %p1363
      $region42: #{tpu_custom_call.1} parent=5 // pred_check_branch
        %1366 = sbr.rel (%p1364) target = $region44
      $region43: #{tpu_custom_call.1} parent=5 // pred_region
        %s1367 = ssub.s32 %s15, 2
        // Predicated region
        $region45: #{tpu_custom_call.1} parent=43 // pred_check
          %p1368 = pneg %p91
        $region46: #{tpu_custom_call.1} parent=43 // pred_check_branch
          %1370 = sbr.rel (%p1368) target = $region48
        $region47: #{tpu_custom_call.1} parent=43 // pred_region
          %s1371 = sand.u32 %s76, 1
          %s1372 = scalar_lea.sflag [#allocation4], %s1371
          %s1373 = sand.u32 %s76, 1
          %s1374 = smul.addr %s1373, 520
          %s1375 = scalar_lea.vmem [#allocation7], %s1374
          %1376 = dma.done %s1372, 8320
        $region48: #{tpu_custom_call.1} parent=43 // pred_fallthru
          _
      $region44: #{tpu_custom_call.1} parent=5 // pred_fallthru
        _
    $region6: #{tpu_custom_call.1} parent=1 // loop_footer
      %s19 = sadd.s32 1, %s15
    $region7: #{tpu_custom_call.1} parent=1 // loop_footer_branch
      %14 = sbr.rel target = $region3
    $region8: #{tpu_custom_call.1} parent=1 // loop_exit
      _
    %1377 = vsyncpa [#allocation3], 1
    %s1378 = scalar_lea.sflag [#allocation3], 1
    %1379 = vsyncpa %s1378, 1
    %1380 = vsyncpa [#allocation6], 1
    %s1381 = scalar_lea.sflag [#allocation6], 1
    %1382 = vsyncpa %s1381, 1
    %1383 = vsyncpa [#allocation4], 1
    %s1384 = scalar_lea.sflag [#allocation4], 1
    %1385 = vsyncpa %s1384, 1

</llo_original>
